<compile_context>
chip_gen: v5e
topology: v5e:2x2
jax: 0.10.0
libtpu: 0.0.40
codegen_flags: <defaults>
</compile_context>

<pallas_src>
import jax
import jax.numpy as jnp
from jax.experimental import pallas as pl
from jax.experimental.pallas import tpu as pltpu

IN_FEATURES = 768
OUT_FEATURES = 768

# Cap the batch tile: block_b=1024 => x f32 (2x3 MiB) + out f32 (2x3 MiB)
# + w bf16 (1.125 MiB, single-buffered) ~= 13.2 MiB of VMEM.
_MAX_BLOCK_B = 1024


def linear_kernel(x_ref, w_ref, b_ref, o_ref):
    # x_ref: [tb, 768] (f32 or bf16), w_ref: [768, 768] bf16,
    # b_ref: [1, 768] f32, o_ref: [tb, 768] (f32 or bf16).
    # Cast x to bf16 in-kernel (VPU cast is free under the MXU/DMA), feed the
    # MXU bf16 operands, accumulate in f32, add bias in f32, cast on store.
    x_bf16 = x_ref[...].astype(jnp.bfloat16)
    acc = jnp.dot(x_bf16, w_ref[...], preferred_element_type=jnp.float32)
    o_ref[...] = (acc + b_ref[...]).astype(o_ref.dtype)


def prepare_params(w, b):
    """One-time parameter preparation (do NOT call per forward).

    w: [768, 768] PyTorch-layout weight (out_features, in_features)
    b: [768] bias
    Returns (w_io_bf16 [in, out] bf16, b2d [1, out] f32).
    """
    assert w.shape == (OUT_FEATURES, IN_FEATURES)
    assert b.shape == (OUT_FEATURES,)
    w_io_bf16 = w.T.astype(jnp.bfloat16)                       # x @ W layout
    b2d = b.astype(jnp.float32).reshape(1, OUT_FEATURES)
    return w_io_bf16, b2d


def _round_up8(n):
    return -(-n // 8) * 8


def _pick_block_b(B, requested=None):
    """Pick a batch tile: multiple of 8 (f32 sublane) or == B."""
    if requested is not None:
        assert requested == B or requested % 8 == 0, (
            "block_b must be a multiple of 8 (f32 sublane packing) or == B")
        return min(requested, B)
    if B <= 256:
        if B >= 128:
            # v5e: keep the M tile >= 128 so the 128-row MXU stays fed.
            return B
        # Small batch: try for two grid steps (pipelining + v7x megacore)
        # while keeping 8-row sublane alignment.
        half = _round_up8(-(-B // 2))
        return half if half < B else B
    # B > 256: guarantee >= 2 grid steps (v7x has two TensorCores) with tiles
    # capped at _MAX_BLOCK_B.
    half = _round_up8(-(-B // 2))
    return min(_MAX_BLOCK_B, half)


def fc_forward(x, w_io_bf16, b2d, *, block_b=None, out_dtype=jnp.float32):
    """Forward of FC: x @ W + b with W already in [in, out] bf16 layout.

    x: [B, 768] f32 (or bf16)   -- cast to bf16 happens inside the kernel
    w_io_bf16: [768, 768] bf16  -- from prepare_params (PyTorch w transposed)
    b2d: [1, 768] f32           -- from prepare_params
    out_dtype: f32 (default, matches nn.Linear) or bf16 (halves writeback).
    """
    B, F = x.shape
    assert F == IN_FEATURES
    assert w_io_bf16.shape == (IN_FEATURES, OUT_FEATURES)
    assert b2d.shape == (1, OUT_FEATURES)

    block_b = _pick_block_b(B, block_b)
    grid_b = pl.cdiv(B, block_b)          # ragged last tile is fine (masked)

    x_bytes = B * IN_FEATURES * jnp.dtype(x.dtype).itemsize
    w_bytes = IN_FEATURES * OUT_FEATURES * jnp.dtype(w_io_bf16.dtype).itemsize
    b_bytes = OUT_FEATURES * 4
    o_bytes = B * OUT_FEATURES * jnp.dtype(out_dtype).itemsize
    cost = pl.CostEstimate(
        flops=2 * B * IN_FEATURES * OUT_FEATURES,
        transcendentals=0,
        bytes_accessed=x_bytes + w_bytes + b_bytes + o_bytes,
    )

    return pl.pallas_call(
        linear_kernel,
        out_shape=jax.ShapeDtypeStruct((B, OUT_FEATURES), out_dtype),
        grid_spec=pltpu.PrefetchScalarGridSpec(
            num_scalar_prefetch=0,
            grid=(grid_b,),
            in_specs=[
                pl.BlockSpec((block_b, IN_FEATURES), lambda i: (i, 0)),
                # Weight & bias: constant index_map -> fetched once; no need
                # for a second pipeline buffer.
                pl.BlockSpec((IN_FEATURES, OUT_FEATURES), lambda i: (0, 0),
                             pipeline_mode=pl.Buffered(1)),
                pl.BlockSpec((1, OUT_FEATURES), lambda i: (0, 0),
                             pipeline_mode=pl.Buffered(1)),
            ],
            out_specs=pl.BlockSpec((block_b, OUT_FEATURES), lambda i: (i, 0)),
        ),
        compiler_params=pltpu.CompilerParams(
            dimension_semantics=("parallel",),      # megacore-shardable
            vmem_limit_bytes=32 * 1024 * 1024,      # headroom for 1024-row tiles
        ),
        cost_estimate=cost,
    )(x, w_io_bf16, b2d)


if __name__ == "__main__":
    key = jax.random.PRNGKey(0)
    kx, kw, kb = jax.random.split(key, 3)

    # Small but multi-tile batch: B=32 -> auto block_b=16 -> grid=(2,),
    # exercising the pipelined / megacore-shardable path.
    B = 32
    x = jax.random.normal(kx, (B, IN_FEATURES), dtype=jnp.float32)

    # Mimic nn.Linear init: uniform(-1/sqrt(fan_in), 1/sqrt(fan_in)).
    bound = 1.0 / (IN_FEATURES ** 0.5)
    w = jax.random.uniform(kw, (OUT_FEATURES, IN_FEATURES),
                           minval=-bound, maxval=bound, dtype=jnp.float32)
    b = jax.random.uniform(kb, (OUT_FEATURES,),
                           minval=-bound, maxval=bound, dtype=jnp.float32)

    # One-time weight prep (hoisted out of the per-call path).
    w_io_bf16, b2d = prepare_params(w, b)

    # Reference with identical bf16-cast operands, f32 accumulation.
    x_bf = x.astype(jnp.bfloat16).astype(jnp.float32)
    w_bf = w.astype(jnp.bfloat16).astype(jnp.float32)
    ref = x_bf @ w_bf.T + b
    ref_f32 = x @ w.T + b

    # 1) Default path: f32 output, auto tiling.
    out = jax.block_until_ready(fc_forward(x, w_io_bf16, b2d))
    assert out.shape == (B, OUT_FEATURES) and out.dtype == jnp.float32
    assert jnp.allclose(out, ref, atol=1e-3, rtol=1e-3)
    assert jnp.allclose(out, ref_f32, atol=5e-2, rtol=5e-2)

    # 2) Ragged batch (pl.cdiv tiling, partial last tile masked on store).
    Br = 24
    out_r = jax.block_until_ready(fc_forward(x[:Br], w_io_bf16, b2d, block_b=16))
    assert out_r.shape == (Br, OUT_FEATURES)
    assert jnp.allclose(out_r, ref[:Br], atol=1e-3, rtol=1e-3)

    # 3) bf16 output path (halves writeback traffic in the HBM-bound regime).
    out_bf16 = jax.block_until_ready(
        fc_forward(x, w_io_bf16, b2d, out_dtype=jnp.bfloat16))
    assert out_bf16.dtype == jnp.bfloat16
    assert jnp.allclose(out_bf16.astype(jnp.float32), ref, atol=3e-2, rtol=3e-2)

    print("KERNEL_OK")
</pallas_src>

<mosaic_0001>
module attributes {stable_mosaic.version = 11 : i64} {
  func.func @linear_kernel(%arg0: i32, %arg1: memref<16x768xf32, #tpu.memory_space<vmem>>, %arg2: memref<768x768xbf16, #tpu.memory_space<vmem>>, %arg3: memref<1x768xf32, #tpu.memory_space<vmem>>, %arg4: memref<16x768xf32, #tpu.memory_space<vmem>>) attributes {dimension_semantics = [#tpu.dimension_semantics<parallel>], iteration_bounds = array<i64: 2>, scalar_prefetch = 0 : i64, scratch_operands = 0 : i64, tpu.core_type = #tpu.core_type<tc>, window_params = [{transform_indices = @transform_0, window_bounds = array<i64: 16, 768>}, {pipeline_mode = #tpu.pipeline_mode<synchronous>, transform_indices = @transform_1, window_bounds = array<i64: 768, 768>}, {pipeline_mode = #tpu.pipeline_mode<synchronous>, transform_indices = @transform_2, window_bounds = array<i64: 1, 768>}, {transform_indices = @transform_3, window_bounds = array<i64: 16, 768>}]} {
    %c0 = arith.constant 0 : index
    %c0_0 = arith.constant 0 : index
    %0 = vector.load %arg1[%c0, %c0_0] : memref<16x768xf32, #tpu.memory_space<vmem>>, vector<16x768xf32>
    %1 = arith.truncf %0 : vector<16x768xf32> to vector<16x768xbf16>
    %c0_1 = arith.constant 0 : index
    %c0_2 = arith.constant 0 : index
    %2 = vector.load %arg2[%c0_1, %c0_2] : memref<768x768xbf16, #tpu.memory_space<vmem>>, vector<768x768xbf16>
    %cst = arith.constant dense<0.000000e+00> : vector<16x768xf32>
    %3 = tpu.matmul %1, %2, %cst {dimension_numbers = #tpu.dot_dimension_numbers<[1], [0], [0], [1], [0, 0, 1, 1], [], []>} : vector<16x768xbf16>, vector<768x768xbf16>, vector<16x768xf32> -> vector<16x768xf32>
    %c0_3 = arith.constant 0 : index
    %c0_4 = arith.constant 0 : index
    %4 = vector.load %arg3[%c0_3, %c0_4] : memref<1x768xf32, #tpu.memory_space<vmem>>, vector<1x768xf32>
    %5 = vector.broadcast %4 : vector<1x768xf32> to vector<16x768xf32>
    %6 = arith.addf %3, %5 : vector<16x768xf32>
    %c0_5 = arith.constant 0 : index
    %c0_6 = arith.constant 0 : index
    %7 = vector.load %arg4[%c0_5, %c0_6] : memref<16x768xf32, #tpu.memory_space<vmem>>, vector<16x768xf32>
    tpu.vector_store %arg4[%c0_5, %c0_6], %6 {strides = array<i32>} : memref<16x768xf32, #tpu.memory_space<vmem>>, vector<16x768xf32>,
    return
  }
  func.func @transform_0(%arg0: i32) -> (i32, i32) {
    %c0_i32 = arith.constant 0 : i32
    %c0_i32_0 = arith.constant 0 : i32
    return %arg0, %c0_i32 : i32, i32
  }
  func.func @transform_1(%arg0: i32) -> (i32, i32) {
    %c0_i32 = arith.constant 0 : i32
    %c0_i32_0 = arith.constant 0 : i32
    %c0_i32_1 = arith.constant 0 : i32
    return %c0_i32, %c0_i32_0 : i32, i32
  }
  func.func @transform_2(%arg0: i32) -> (i32, i32) {
    %c0_i32 = arith.constant 0 : i32
    %c0_i32_0 = arith.constant 0 : i32
    %c0_i32_1 = arith.constant 0 : i32
    return %c0_i32, %c0_i32_0 : i32, i32
  }
  func.func @transform_3(%arg0: i32) -> (i32, i32) {
    %c0_i32 = arith.constant 0 : i32
    %c0_i32_0 = arith.constant 0 : i32
    return %arg0, %c0_i32 : i32, i32
  }
}

</mosaic_0001>

<llo_original>
// kernel: tpu_custom_call.1
$region0: #{tpu_custom_call.1}
  #allocation0 [shape = 'u32[]', space=smem, size = 0x4, offset = 0x4, fixed_abs, tag = 'smem constant byte address 0x4 - core index']
  #allocation1 [shape = 'u32[72,128]{1,0:T(1,128)}', space=vmem, size = 0x9000, scoped, tag = 'internal scratch']
  %s0 = inlined_call_operand.hbm [shape: f32[32,768], index: 0, kind: input, shape index: {}]
  %s1 = inlined_call_operand.hbm [shape: bf16[768,768], index: 1, kind: input, shape index: {}]
  %s2 = inlined_call_operand.hbm [shape: f32[1,768], index: 2, kind: input, shape index: {}]
  %s3 = inlined_call_operand.hbm [shape: f32[32,768], index: 3, kind: output, shape index: {}]
  %s4 = sld [smem:[#allocation0]]
  $region57: #{tpu_custom_call.1} parent=0
    _
  %s6 = ssub.s32 1, %s4
  %s7 = scalar_select 0, %s6, %s4
  $region1: #{tpu_custom_call.1} parent=0
    #allocation2 [shape = 'u8[98304]{0}', space=vmem, size = 0x18000, scoped, tag = 'input window, operand 0']
    #allocation3 [shape = 's32[2]{0}', space=sflag, size = 0x8, scoped, tag = 'scoped memory for tpu_custom_call.1']
    #allocation4 [shape = 's32[2]{0}', space=sflag, size = 0x8, scoped, tag = 'scoped memory for tpu_custom_call.1']
    #allocation5 [shape = 'u8[1179648]{0}', space=vmem, size = 0x120000, scoped, tag = 'input window, operand 1, single buffered']
    #allocation6 [shape = 's32[1]{0}', space=sflag, size = 0x4, scoped, tag = 'scoped memory for tpu_custom_call.1']
    #allocation7 [shape = 'u8[3072]{0}', space=vmem, size = 0xc00, scoped, tag = 'input window, operand 2, single buffered']
    #allocation8 [shape = 'u8[98304]{0}', space=vmem, size = 0x18000, scoped, tag = 'output window, operand 0']
    %8 = vsyncpa [#allocation3], 0
    %s9 = scalar_lea.sflag [#allocation3], 1
    %10 = vsyncpa %s9, 0
    %11 = vsyncpa [#allocation6], 0
    %12 = vsyncpa [#allocation4], 0
    %s13 = scalar_lea.sflag [#allocation4], 1
    %14 = vsyncpa %s13, 0
    loop: start=0, step=1, limit=4
    $region2: #{tpu_custom_call.1} parent=1 // loop_pre_header
      _
    $region3: #{tpu_custom_call.1} parent=1 // loop_header
      %s16 = sphi 0, %s20
      %p17 = scmp.ge.s32.totalorder %s16, 4
      %s26 = sphi 0, %s28
      %s29 = sphi 0, %s26
      %s30 = sphi 0, %s29
      %s46 = sphi 0, %s30
      %s50 = sphi 0, %s50
      %s52 = sphi 0, %s50
      %s53 = sphi 0, %s52
      %s67 = sphi 0, %s53
      %s71 = sphi 0, %s71
      %s73 = sphi 0, %s71
      %s74 = sphi 0, %s73
      %s88 = sphi 0, %s74
      %s94 = sphi 0, %s96
      %s97 = sphi 0, %s94
      %s98 = sphi 0, %s97
      %s114 = sphi 0, %s98
    $region4: #{tpu_custom_call.1} parent=1 // loop_header_branch
      %19 = sbr.rel (%p17) target = $region8
    $region5: #{tpu_custom_call.1} parent=1 // loop_body
      %s21 = ssub.s32 %s16, 1
      %s22 = ssub.s32 %s16, 2
      %s23 = sadd.s32 %s16, 1
      %s24 = ssub.s32 %s16, %s23
      %p25 = scmp.eq.s32.totalorder %s24, 0
      %s27 = sadd.s32 %s26, 1
      %s28 = scalar_select %p25, %s26, %s27
      %p31 = pneg %p25
      %p32 = scmp.eq.s32.totalorder %s16, 1
      %p33 = por %p31, %p32
      %p34 = scmp.ne.s32.totalorder %s26, %s29
      %p35 = scmp.eq.s32.totalorder %s16, 0
      %p36 = por %p34, %p35
      %p37 = scmp.ne.s32.totalorder %s26, %s29
      %p38 = scmp.eq.s32.totalorder %s21, 1
      %p39 = por %p37, %p38
      %p40 = scmp.ne.s32.totalorder %s29, %s30
      %p41 = scmp.eq.s32.totalorder %s21, 0
      %p42 = por %p40, %p41
      %p43 = scmp.ne.s32.totalorder %s29, %s30
      %p44 = scmp.eq.s32.totalorder %s22, 1
      %p45 = por %p43, %p44
      %p47 = scmp.ne.s32.totalorder %s30, %s46
      %p48 = scmp.eq.s32.totalorder %s22, 0
      %p49 = por %p47, %p48
      %s51 = sadd.s32 %s50, 1
      %p54 = scmp.eq.s32.totalorder %s16, 1
      %p55 = scmp.ne.s32.totalorder %s50, %s52
      %p56 = scmp.eq.s32.totalorder %s16, 0
      %p57 = por %p55, %p56
      %p58 = scmp.ne.s32.totalorder %s50, %s52
      %p59 = scmp.eq.s32.totalorder %s21, 1
      %p60 = por %p58, %p59
      %p61 = scmp.ne.s32.totalorder %s52, %s53
      %p62 = scmp.eq.s32.totalorder %s21, 0
      %p63 = por %p61, %p62
      %p64 = scmp.ne.s32.totalorder %s52, %s53
      %p65 = scmp.eq.s32.totalorder %s22, 1
      %p66 = por %p64, %p65
      %p68 = scmp.ne.s32.totalorder %s53, %s67
      %p69 = scmp.eq.s32.totalorder %s22, 0
      %p70 = por %p68, %p69
      %s72 = sadd.s32 %s71, 1
      %p75 = scmp.eq.s32.totalorder %s16, 1
      %p76 = scmp.ne.s32.totalorder %s71, %s73
      %p77 = scmp.eq.s32.totalorder %s16, 0
      %p78 = por %p76, %p77
      %p79 = scmp.ne.s32.totalorder %s71, %s73
      %p80 = scmp.eq.s32.totalorder %s21, 1
      %p81 = por %p79, %p80
      %p82 = scmp.ne.s32.totalorder %s73, %s74
      %p83 = scmp.eq.s32.totalorder %s21, 0
      %p84 = por %p82, %p83
      %p85 = scmp.ne.s32.totalorder %s73, %s74
      %p86 = scmp.eq.s32.totalorder %s22, 1
      %p87 = por %p85, %p86
      %p89 = scmp.ne.s32.totalorder %s74, %s88
      %p90 = scmp.eq.s32.totalorder %s22, 0
      %p91 = por %p89, %p90
      %s92 = ssub.s32 %s16, %s23
      %p93 = scmp.eq.s32.totalorder %s92, 0
      %s95 = sadd.s32 %s94, 1
      %s96 = scalar_select %p93, %s94, %s95
      %p99 = pneg %p93
      %p100 = scmp.eq.s32.totalorder %s16, 1
      %p101 = por %p99, %p100
      %p102 = scmp.ne.s32.totalorder %s94, %s97
      %p103 = scmp.eq.s32.totalorder %s16, 0
      %p104 = por %p102, %p103
      %p105 = scmp.ne.s32.totalorder %s94, %s97
      %p106 = scmp.eq.s32.totalorder %s21, 1
      %p107 = por %p105, %p106
      %p108 = scmp.ne.s32.totalorder %s97, %s98
      %p109 = scmp.eq.s32.totalorder %s21, 0
      %p110 = por %p108, %p109
      %p111 = scmp.ne.s32.totalorder %s97, %s98
      %p112 = scmp.eq.s32.totalorder %s22, 1
      %p113 = por %p111, %p112
      %p115 = scmp.ne.s32.totalorder %s98, %s114
      %p116 = scmp.eq.s32.totalorder %s22, 0
      %p117 = por %p115, %p116
      %p118 = scmp.le.s32.totalorder 1, %s16
      %p119 = scmp.lt.s32.totalorder %s16, 3
      %p120 = pnand %p118, %p119
      %p121 = pneg %p120
      // Predicated region
      $region9: #{tpu_custom_call.1} parent=5 // pred_check
        _
      $region10: #{tpu_custom_call.1} parent=5 // pred_check_branch
        %123 = sbr.rel (%p120) target = $region12
      $region11: #{tpu_custom_call.1} parent=5 // pred_region
        %s124 = ssub.s32 %s16, 1
        // Predicated region
        $region13: #{tpu_custom_call.1} parent=11 // pred_check
          %p125 = pneg %p63
        $region14: #{tpu_custom_call.1} parent=11 // pred_check_branch
          %127 = sbr.rel (%p125) target = $region16
        $region15: #{tpu_custom_call.1} parent=11 // pred_region
          %129 = vsyncadd [#allocation6], 0
          %s130 = sshll.u32 %s1, 4
          %s131 = int_to_ptr.hbm [resolvable:$true] %s130
          %s132 = sshll.u32 [#allocation5], 4
          %s133 = int_to_ptr.vmem [resolvable:$true] %s132
          %138 = dma.hbm_to_vmem [thread:$0]  %s131, 36864, %s133, [#allocation6], 384, 384, 24
        $region16: #{tpu_custom_call.1} parent=11 // pred_fallthru
          _
        // Predicated region
        $region17: #{tpu_custom_call.1} parent=11 // pred_check
          %p139 = pneg %p84
        $region18: #{tpu_custom_call.1} parent=11 // pred_check_branch
          %141 = sbr.rel (%p139) target = $region20
        $region19: #{tpu_custom_call.1} parent=11 // pred_region
          %143 = vsyncadd [#allocation6], 0
          %s145 = sshll.u32 %s2, 4
          %s146 = int_to_ptr.hbm [resolvable:$true] %s145
          %s147 = sshll.u32 [#allocation7], 4
          %s148 = int_to_ptr.vmem [resolvable:$true] %s147
          %150 = dma.hbm_to_vmem [thread:$0]  %s146, 96, %s148, [#allocation6]
        $region20: #{tpu_custom_call.1} parent=11 // pred_fallthru
          _
      $region12: #{tpu_custom_call.1} parent=5 // pred_fallthru
        _
      %p151 = scmp.lt.s32.totalorder %s16, 2
      // Predicated region
      $region21: #{tpu_custom_call.1} parent=5 // pred_check
        %p152 = pneg %p151
      $region22: #{tpu_custom_call.1} parent=5 // pred_check_branch
        %154 = sbr.rel (%p152) target = $region24
      $region23: #{tpu_custom_call.1} parent=5 // pred_region
        // Predicated region
        $region25: #{tpu_custom_call.1} parent=23 // pred_check
          %p155 = pneg %p36
        $region26: #{tpu_custom_call.1} parent=23 // pred_check_branch
          %157 = sbr.rel (%p155) target = $region28
        $region27: #{tpu_custom_call.1} parent=23 // pred_region
          %s158 = sand.u32 %s26, 1
          %s159 = scalar_lea.sflag [#allocation3], %s158
          %s160 = sand.u32 %s26, 1
          %s161 = smul.addr %s160, 96
          %s162 = scalar_lea.vmem [#allocation2], %s161
          %s163 = smul.u32 2, %s16
          %165 = vsyncadd %s159, 0
          %s166 = smul.addr %s163, 6
          %s167 = smul.addr %s166, 8
          %s168 = scalar_lea.hbm %s0, %s167
          %s169 = sshll.u32 %s168, 4
          %s170 = int_to_ptr.hbm [resolvable:$true] %s169
          %s171 = sshll.u32 %s162, 4
          %s172 = int_to_ptr.vmem [resolvable:$true] %s171
          %177 = dma.hbm_to_vmem [thread:$0]  %s170, 1536, %s172, %s159, 768, 768, 48
        $region28: #{tpu_custom_call.1} parent=23 // pred_fallthru
          _
      $region24: #{tpu_custom_call.1} parent=5 // pred_fallthru
        _
      %p178 = scmp.le.s32.totalorder 1, %s16
      %p179 = scmp.lt.s32.totalorder %s16, 3
      %p180 = pnand %p178, %p179
      %p181 = pneg %p180
      // Predicated region
      $region29: #{tpu_custom_call.1} parent=5 // pred_check
        _
      $region30: #{tpu_custom_call.1} parent=5 // pred_check_branch
        %183 = sbr.rel (%p180) target = $region32
      $region31: #{tpu_custom_call.1} parent=5 // pred_region
        %s184 = ssub.s32 %s16, 1
        %s185 = sand.u32 %s29, 1
        %s186 = scalar_lea.sflag [#allocation3], %s185
        %s187 = sand.u32 %s29, 1
        %s188 = smul.addr %s187, 96
        %s189 = scalar_lea.vmem [#allocation2], %s188
        // Predicated region
        $region33: #{tpu_custom_call.1} parent=31 // pred_check
          %p190 = pneg %p42
        $region34: #{tpu_custom_call.1} parent=31 // pred_check_branch
          %192 = sbr.rel (%p190) target = $region36
        $region35: #{tpu_custom_call.1} parent=31 // pred_region
          %194 = dma.done %s186, 1536
        $region36: #{tpu_custom_call.1} parent=31 // pred_fallthru
          _
        // Predicated region
        $region37: #{tpu_custom_call.1} parent=31 // pred_check
          %p195 = pneg %p63
        $region38: #{tpu_custom_call.1} parent=31 // pred_check_branch
          %197 = sbr.rel (%p195) target = $region40
        $region39: #{tpu_custom_call.1} parent=31 // pred_region
          %199 = dma.done [#allocation6], 36864
        $region40: #{tpu_custom_call.1} parent=31 // pred_fallthru
          _
        // Predicated region
        $region41: #{tpu_custom_call.1} parent=31 // pred_check
          %p200 = pneg %p84
        $region42: #{tpu_custom_call.1} parent=31 // pred_check_branch
          %202 = sbr.rel (%p200) target = $region44
        $region43: #{tpu_custom_call.1} parent=31 // pred_region
          %204 = dma.done [#allocation6], 96
        $region44: #{tpu_custom_call.1} parent=31 // pred_fallthru
          _
        %s205 = sand.u32 %s29, 1
        %s206 = scalar_lea.sflag [#allocation3], %s205
        %s207 = sand.u32 %s29, 1
        %s208 = smul.addr %s207, 96
        %s209 = scalar_lea.vmem [#allocation2], %s208
        %p210 = pneg %p42
        %p211 = pneg %p39
        %p212 = pneg %p63
        %p213 = pneg %p60
        %p214 = pneg %p84
        %p215 = pneg %p81
        %p216 = pneg %p110
        %p217 = pneg %p107
        %s218 = sand.u32 %s97, 1
        %s219 = scalar_lea.sflag [#allocation4], %s218
        %s220 = sand.u32 %s97, 1
        %s221 = smul.addr %s220, 96
        %s222 = scalar_lea.vmem [#allocation8], %s221
        %s223 = smul.u32 2, %s21
        %s224 = smul.u32 2, %s21
        %v225 = vld [vmem:[%s189] sm:$0xff]
        %v226 = vld [vmem:[%s189 + $0x8] sm:$0xff]
        %v227 = vld [vmem:[%s189 + $0x10] sm:$0xff]
        %v228 = vld [vmem:[%s189 + $0x18] sm:$0xff]
        %v229 = vld [vmem:[%s189 + $0x20] sm:$0xff]
        %v230 = vld [vmem:[%s189 + $0x28] sm:$0xff]
        %v231 = vld [vmem:[%s189 + $0x30] sm:$0xff]
        %v232 = vld [vmem:[%s189 + $0x38] sm:$0xff]
        %v233 = vld [vmem:[%s189 + $0x40] sm:$0xff]
        %v234 = vld [vmem:[%s189 + $0x48] sm:$0xff]
        %v235 = vld [vmem:[%s189 + $0x50] sm:$0xff]
        %v236 = vld [vmem:[%s189 + $0x58] sm:$0xff]
        %v237 = vpack.c.bf16 %v231, %v225
        %v238 = vpack.c.bf16 %v232, %v226
        %v239 = vpack.c.bf16 %v233, %v227
        %v240 = vpack.c.bf16 %v234, %v228
        %v241 = vpack.c.bf16 %v235, %v229
        %v242 = vpack.c.bf16 %v236, %v230
        %v243 = vld [vmem:[#allocation5] sm:$0xff]
        %v244 = vld [vmem:[#allocation5 + $0x8] sm:$0xff]
        %v245 = vld [vmem:[#allocation5 + $0x10] sm:$0xff]
        %v246 = vld [vmem:[#allocation5 + $0x18] sm:$0xff]
        %v247 = vld [vmem:[#allocation5 + $0x20] sm:$0xff]
        %v248 = vld [vmem:[#allocation5 + $0x28] sm:$0xff]
        %v249 = vld [vmem:[#allocation5 + $0x30] sm:$0xff]
        %v250 = vld [vmem:[#allocation5 + $0x38] sm:$0xff]
        %v251 = vld [vmem:[#allocation5 + $0x40] sm:$0xff]
        %v252 = vld [vmem:[#allocation5 + $0x48] sm:$0xff]
        %v253 = vld [vmem:[#allocation5 + $0x50] sm:$0xff]
        %v254 = vld [vmem:[#allocation5 + $0x58] sm:$0xff]
        %v255 = vld [vmem:[#allocation5 + $0x60] sm:$0xff]
        %v256 = vld [vmem:[#allocation5 + $0x68] sm:$0xff]
        %v257 = vld [vmem:[#allocation5 + $0x70] sm:$0xff]
        %v258 = vld [vmem:[#allocation5 + $0x78] sm:$0xff]
        %v259 = vld [vmem:[#allocation5 + $0x80] sm:$0xff]
        %v260 = vld [vmem:[#allocation5 + $0x88] sm:$0xff]
        %v261 = vld [vmem:[#allocation5 + $0x90] sm:$0xff]
        %v262 = vld [vmem:[#allocation5 + $0x98] sm:$0xff]
        %v263 = vld [vmem:[#allocation5 + $0xa0] sm:$0xff]
        %v264 = vld [vmem:[#allocation5 + $0xa8] sm:$0xff]
        %v265 = vld [vmem:[#allocation5 + $0xb0] sm:$0xff]
        %v266 = vld [vmem:[#allocation5 + $0xb8] sm:$0xff]
        %v267 = vld [vmem:[#allocation5 + $0xc0] sm:$0xff]
        %v268 = vld [vmem:[#allocation5 + $0xc8] sm:$0xff]
        %v269 = vld [vmem:[#allocation5 + $0xd0] sm:$0xff]
        %v270 = vld [vmem:[#allocation5 + $0xd8] sm:$0xff]
        %v271 = vld [vmem:[#allocation5 + $0xe0] sm:$0xff]
        %v272 = vld [vmem:[#allocation5 + $0xe8] sm:$0xff]
        %v273 = vld [vmem:[#allocation5 + $0xf0] sm:$0xff]
        %v274 = vld [vmem:[#allocation5 + $0xf8] sm:$0xff]
        %v275 = vld [vmem:[#allocation5 + $0x100] sm:$0xff]
        %v276 = vld [vmem:[#allocation5 + $0x108] sm:$0xff]
        %v277 = vld [vmem:[#allocation5 + $0x110] sm:$0xff]
        %v278 = vld [vmem:[#allocation5 + $0x118] sm:$0xff]
        %v279 = vld [vmem:[#allocation5 + $0x120] sm:$0xff]
        %v280 = vld [vmem:[#allocation5 + $0x128] sm:$0xff]
        %v281 = vld [vmem:[#allocation5 + $0x130] sm:$0xff]
        %v282 = vld [vmem:[#allocation5 + $0x138] sm:$0xff]
        %v283 = vld [vmem:[#allocation5 + $0x140] sm:$0xff]
        %v284 = vld [vmem:[#allocation5 + $0x148] sm:$0xff]
        %v285 = vld [vmem:[#allocation5 + $0x150] sm:$0xff]
        %v286 = vld [vmem:[#allocation5 + $0x158] sm:$0xff]
        %v287 = vld [vmem:[#allocation5 + $0x160] sm:$0xff]
        %v288 = vld [vmem:[#allocation5 + $0x168] sm:$0xff]
        %v289 = vld [vmem:[#allocation5 + $0x170] sm:$0xff]
        %v290 = vld [vmem:[#allocation5 + $0x178] sm:$0xff]
        %v291 = vld [vmem:[#allocation5 + $0x180] sm:$0xff]
        %v292 = vld [vmem:[#allocation5 + $0x188] sm:$0xff]
        %v293 = vld [vmem:[#allocation5 + $0x190] sm:$0xff]
        %v294 = vld [vmem:[#allocation5 + $0x198] sm:$0xff]
        %v295 = vld [vmem:[#allocation5 + $0x1a0] sm:$0xff]
        %v296 = vld [vmem:[#allocation5 + $0x1a8] sm:$0xff]
        %v297 = vld [vmem:[#allocation5 + $0x1b0] sm:$0xff]
        %v298 = vld [vmem:[#allocation5 + $0x1b8] sm:$0xff]
        %v299 = vld [vmem:[#allocation5 + $0x1c0] sm:$0xff]
        %v300 = vld [vmem:[#allocation5 + $0x1c8] sm:$0xff]
        %v301 = vld [vmem:[#allocation5 + $0x1d0] sm:$0xff]
        %v302 = vld [vmem:[#allocation5 + $0x1d8] sm:$0xff]
        %v303 = vld [vmem:[#allocation5 + $0x1e0] sm:$0xff]
        %v304 = vld [vmem:[#allocation5 + $0x1e8] sm:$0xff]
        %v305 = vld [vmem:[#allocation5 + $0x1f0] sm:$0xff]
        %v306 = vld [vmem:[#allocation5 + $0x1f8] sm:$0xff]
        %v307 = vld [vmem:[#allocation5 + $0x200] sm:$0xff]
        %v308 = vld [vmem:[#allocation5 + $0x208] sm:$0xff]
        %v309 = vld [vmem:[#allocation5 + $0x210] sm:$0xff]
        %v310 = vld [vmem:[#allocation5 + $0x218] sm:$0xff]
        %v311 = vld [vmem:[#allocation5 + $0x220] sm:$0xff]
        %v312 = vld [vmem:[#allocation5 + $0x228] sm:$0xff]
        %v313 = vld [vmem:[#allocation5 + $0x230] sm:$0xff]
        %v314 = vld [vmem:[#allocation5 + $0x238] sm:$0xff]
        %v315 = vld [vmem:[#allocation5 + $0x240] sm:$0xff]
        %v316 = vld [vmem:[#allocation5 + $0x248] sm:$0xff]
        %v317 = vld [vmem:[#allocation5 + $0x250] sm:$0xff]
        %v318 = vld [vmem:[#allocation5 + $0x258] sm:$0xff]
        %v319 = vld [vmem:[#allocation5 + $0x260] sm:$0xff]
        %v320 = vld [vmem:[#allocation5 + $0x268] sm:$0xff]
        %v321 = vld [vmem:[#allocation5 + $0x270] sm:$0xff]
        %v322 = vld [vmem:[#allocation5 + $0x278] sm:$0xff]
        %v323 = vld [vmem:[#allocation5 + $0x280] sm:$0xff]
        %v324 = vld [vmem:[#allocation5 + $0x288] sm:$0xff]
        %v325 = vld [vmem:[#allocation5 + $0x290] sm:$0xff]
        %v326 = vld [vmem:[#allocation5 + $0x298] sm:$0xff]
        %v327 = vld [vmem:[#allocation5 + $0x2a0] sm:$0xff]
        %v328 = vld [vmem:[#allocation5 + $0x2a8] sm:$0xff]
        %v329 = vld [vmem:[#allocation5 + $0x2b0] sm:$0xff]
        %v330 = vld [vmem:[#allocation5 + $0x2b8] sm:$0xff]
        %v331 = vld [vmem:[#allocation5 + $0x2c0] sm:$0xff]
        %v332 = vld [vmem:[#allocation5 + $0x2c8] sm:$0xff]
        %v333 = vld [vmem:[#allocation5 + $0x2d0] sm:$0xff]
        %v334 = vld [vmem:[#allocation5 + $0x2d8] sm:$0xff]
        %v335 = vld [vmem:[#allocation5 + $0x2e0] sm:$0xff]
        %v336 = vld [vmem:[#allocation5 + $0x2e8] sm:$0xff]
        %v337 = vld [vmem:[#allocation5 + $0x2f0] sm:$0xff]
        %v338 = vld [vmem:[#allocation5 + $0x2f8] sm:$0xff]
        %v339 = vld [vmem:[#allocation5 + $0x300] sm:$0xff]
        %v340 = vld [vmem:[#allocation5 + $0x308] sm:$0xff]
        %v341 = vld [vmem:[#allocation5 + $0x310] sm:$0xff]
        %v342 = vld [vmem:[#allocation5 + $0x318] sm:$0xff]
        %v343 = vld [vmem:[#allocation5 + $0x320] sm:$0xff]
        %v344 = vld [vmem:[#allocation5 + $0x328] sm:$0xff]
        %v345 = vld [vmem:[#allocation5 + $0x330] sm:$0xff]
        %v346 = vld [vmem:[#allocation5 + $0x338] sm:$0xff]
        %v347 = vld [vmem:[#allocation5 + $0x340] sm:$0xff]
        %v348 = vld [vmem:[#allocation5 + $0x348] sm:$0xff]
        %v349 = vld [vmem:[#allocation5 + $0x350] sm:$0xff]
        %v350 = vld [vmem:[#allocation5 + $0x358] sm:$0xff]
        %v351 = vld [vmem:[#allocation5 + $0x360] sm:$0xff]
        %v352 = vld [vmem:[#allocation5 + $0x368] sm:$0xff]
        %v353 = vld [vmem:[#allocation5 + $0x370] sm:$0xff]
        %v354 = vld [vmem:[#allocation5 + $0x378] sm:$0xff]
        %v355 = vld [vmem:[#allocation5 + $0x380] sm:$0xff]
        %v356 = vld [vmem:[#allocation5 + $0x388] sm:$0xff]
        %v357 = vld [vmem:[#allocation5 + $0x390] sm:$0xff]
        %v358 = vld [vmem:[#allocation5 + $0x398] sm:$0xff]
        %v359 = vld [vmem:[#allocation5 + $0x3a0] sm:$0xff]
        %v360 = vld [vmem:[#allocation5 + $0x3a8] sm:$0xff]
        %v361 = vld [vmem:[#allocation5 + $0x3b0] sm:$0xff]
        %v362 = vld [vmem:[#allocation5 + $0x3b8] sm:$0xff]
        %v363 = vld [vmem:[#allocation5 + $0x3c0] sm:$0xff]
        %v364 = vld [vmem:[#allocation5 + $0x3c8] sm:$0xff]
        %v365 = vld [vmem:[#allocation5 + $0x3d0] sm:$0xff]
        %v366 = vld [vmem:[#allocation5 + $0x3d8] sm:$0xff]
        %v367 = vld [vmem:[#allocation5 + $0x3e0] sm:$0xff]
        %v368 = vld [vmem:[#allocation5 + $0x3e8] sm:$0xff]
        %v369 = vld [vmem:[#allocation5 + $0x3f0] sm:$0xff]
        %v370 = vld [vmem:[#allocation5 + $0x3f8] sm:$0xff]
        %v371 = vld [vmem:[#allocation5 + $0x400] sm:$0xff]
        %v372 = vld [vmem:[#allocation5 + $0x408] sm:$0xff]
        %v373 = vld [vmem:[#allocation5 + $0x410] sm:$0xff]
        %v374 = vld [vmem:[#allocation5 + $0x418] sm:$0xff]
        %v375 = vld [vmem:[#allocation5 + $0x420] sm:$0xff]
        %v376 = vld [vmem:[#allocation5 + $0x428] sm:$0xff]
        %v377 = vld [vmem:[#allocation5 + $0x430] sm:$0xff]
        %v378 = vld [vmem:[#allocation5 + $0x438] sm:$0xff]
        %v379 = vld [vmem:[#allocation5 + $0x440] sm:$0xff]
        %v380 = vld [vmem:[#allocation5 + $0x448] sm:$0xff]
        %v381 = vld [vmem:[#allocation5 + $0x450] sm:$0xff]
        %v382 = vld [vmem:[#allocation5 + $0x458] sm:$0xff]
        %v383 = vld [vmem:[#allocation5 + $0x460] sm:$0xff]
        %v384 = vld [vmem:[#allocation5 + $0x468] sm:$0xff]
        %v385 = vld [vmem:[#allocation5 + $0x470] sm:$0xff]
        %v386 = vld [vmem:[#allocation5 + $0x478] sm:$0xff]
        %v387 = vld [vmem:[#allocation5 + $0x480] sm:$0xff]
        %v388 = vld [vmem:[#allocation5 + $0x488] sm:$0xff]
        %v389 = vld [vmem:[#allocation5 + $0x490] sm:$0xff]
        %v390 = vld [vmem:[#allocation5 + $0x498] sm:$0xff]
        %v391 = vld [vmem:[#allocation5 + $0x4a0] sm:$0xff]
        %v392 = vld [vmem:[#allocation5 + $0x4a8] sm:$0xff]
        %v393 = vld [vmem:[#allocation5 + $0x4b0] sm:$0xff]
        %v394 = vld [vmem:[#allocation5 + $0x4b8] sm:$0xff]
        %v395 = vld [vmem:[#allocation5 + $0x4c0] sm:$0xff]
        %v396 = vld [vmem:[#allocation5 + $0x4c8] sm:$0xff]
        %v397 = vld [vmem:[#allocation5 + $0x4d0] sm:$0xff]
        %v398 = vld [vmem:[#allocation5 + $0x4d8] sm:$0xff]
        %v399 = vld [vmem:[#allocation5 + $0x4e0] sm:$0xff]
        %v400 = vld [vmem:[#allocation5 + $0x4e8] sm:$0xff]
        %v401 = vld [vmem:[#allocation5 + $0x4f0] sm:$0xff]
        %v402 = vld [vmem:[#allocation5 + $0x4f8] sm:$0xff]
        %v403 = vld [vmem:[#allocation5 + $0x500] sm:$0xff]
        %v404 = vld [vmem:[#allocation5 + $0x508] sm:$0xff]
        %v405 = vld [vmem:[#allocation5 + $0x510] sm:$0xff]
        %v406 = vld [vmem:[#allocation5 + $0x518] sm:$0xff]
        %v407 = vld [vmem:[#allocation5 + $0x520] sm:$0xff]
        %v408 = vld [vmem:[#allocation5 + $0x528] sm:$0xff]
        %v409 = vld [vmem:[#allocation5 + $0x530] sm:$0xff]
        %v410 = vld [vmem:[#allocation5 + $0x538] sm:$0xff]
        %v411 = vld [vmem:[#allocation5 + $0x540] sm:$0xff]
        %v412 = vld [vmem:[#allocation5 + $0x548] sm:$0xff]
        %v413 = vld [vmem:[#allocation5 + $0x550] sm:$0xff]
        %v414 = vld [vmem:[#allocation5 + $0x558] sm:$0xff]
        %v415 = vld [vmem:[#allocation5 + $0x560] sm:$0xff]
        %v416 = vld [vmem:[#allocation5 + $0x568] sm:$0xff]
        %v417 = vld [vmem:[#allocation5 + $0x570] sm:$0xff]
        %v418 = vld [vmem:[#allocation5 + $0x578] sm:$0xff]
        %v419 = vld [vmem:[#allocation5 + $0x580] sm:$0xff]
        %v420 = vld [vmem:[#allocation5 + $0x588] sm:$0xff]
        %v421 = vld [vmem:[#allocation5 + $0x590] sm:$0xff]
        %v422 = vld [vmem:[#allocation5 + $0x598] sm:$0xff]
        %v423 = vld [vmem:[#allocation5 + $0x5a0] sm:$0xff]
        %v424 = vld [vmem:[#allocation5 + $0x5a8] sm:$0xff]
        %v425 = vld [vmem:[#allocation5 + $0x5b0] sm:$0xff]
        %v426 = vld [vmem:[#allocation5 + $0x5b8] sm:$0xff]
        %v427 = vld [vmem:[#allocation5 + $0x5c0] sm:$0xff]
        %v428 = vld [vmem:[#allocation5 + $0x5c8] sm:$0xff]
        %v429 = vld [vmem:[#allocation5 + $0x5d0] sm:$0xff]
        %v430 = vld [vmem:[#allocation5 + $0x5d8] sm:$0xff]
        %v431 = vld [vmem:[#allocation5 + $0x5e0] sm:$0xff]
        %v432 = vld [vmem:[#allocation5 + $0x5e8] sm:$0xff]
        %v433 = vld [vmem:[#allocation5 + $0x5f0] sm:$0xff]
        %v434 = vld [vmem:[#allocation5 + $0x5f8] sm:$0xff]
        %v435 = vld [vmem:[#allocation5 + $0x600] sm:$0xff]
        %v436 = vld [vmem:[#allocation5 + $0x608] sm:$0xff]
        %v437 = vld [vmem:[#allocation5 + $0x610] sm:$0xff]
        %v438 = vld [vmem:[#allocation5 + $0x618] sm:$0xff]
        %v439 = vld [vmem:[#allocation5 + $0x620] sm:$0xff]
        %v440 = vld [vmem:[#allocation5 + $0x628] sm:$0xff]
        %v441 = vld [vmem:[#allocation5 + $0x630] sm:$0xff]
        %v442 = vld [vmem:[#allocation5 + $0x638] sm:$0xff]
        %v443 = vld [vmem:[#allocation5 + $0x640] sm:$0xff]
        %v444 = vld [vmem:[#allocation5 + $0x648] sm:$0xff]
        %v445 = vld [vmem:[#allocation5 + $0x650] sm:$0xff]
        %v446 = vld [vmem:[#allocation5 + $0x658] sm:$0xff]
        %v447 = vld [vmem:[#allocation5 + $0x660] sm:$0xff]
        %v448 = vld [vmem:[#allocation5 + $0x668] sm:$0xff]
        %v449 = vld [vmem:[#allocation5 + $0x670] sm:$0xff]
        %v450 = vld [vmem:[#allocation5 + $0x678] sm:$0xff]
        %v451 = vld [vmem:[#allocation5 + $0x680] sm:$0xff]
        %v452 = vld [vmem:[#allocation5 + $0x688] sm:$0xff]
        %v453 = vld [vmem:[#allocation5 + $0x690] sm:$0xff]
        %v454 = vld [vmem:[#allocation5 + $0x698] sm:$0xff]
        %v455 = vld [vmem:[#allocation5 + $0x6a0] sm:$0xff]
        %v456 = vld [vmem:[#allocation5 + $0x6a8] sm:$0xff]
        %v457 = vld [vmem:[#allocation5 + $0x6b0] sm:$0xff]
        %v458 = vld [vmem:[#allocation5 + $0x6b8] sm:$0xff]
        %v459 = vld [vmem:[#allocation5 + $0x6c0] sm:$0xff]
        %v460 = vld [vmem:[#allocation5 + $0x6c8] sm:$0xff]
        %v461 = vld [vmem:[#allocation5 + $0x6d0] sm:$0xff]
        %v462 = vld [vmem:[#allocation5 + $0x6d8] sm:$0xff]
        %v463 = vld [vmem:[#allocation5 + $0x6e0] sm:$0xff]
        %v464 = vld [vmem:[#allocation5 + $0x6e8] sm:$0xff]
        %v465 = vld [vmem:[#allocation5 + $0x6f0] sm:$0xff]
        %v466 = vld [vmem:[#allocation5 + $0x6f8] sm:$0xff]
        %v467 = vld [vmem:[#allocation5 + $0x700] sm:$0xff]
        %v468 = vld [vmem:[#allocation5 + $0x708] sm:$0xff]
        %v469 = vld [vmem:[#allocation5 + $0x710] sm:$0xff]
        %v470 = vld [vmem:[#allocation5 + $0x718] sm:$0xff]
        %v471 = vld [vmem:[#allocation5 + $0x720] sm:$0xff]
        %v472 = vld [vmem:[#allocation5 + $0x728] sm:$0xff]
        %v473 = vld [vmem:[#allocation5 + $0x730] sm:$0xff]
        %v474 = vld [vmem:[#allocation5 + $0x738] sm:$0xff]
        %v475 = vld [vmem:[#allocation5 + $0x740] sm:$0xff]
        %v476 = vld [vmem:[#allocation5 + $0x748] sm:$0xff]
        %v477 = vld [vmem:[#allocation5 + $0x750] sm:$0xff]
        %v478 = vld [vmem:[#allocation5 + $0x758] sm:$0xff]
        %v479 = vld [vmem:[#allocation5 + $0x760] sm:$0xff]
        %v480 = vld [vmem:[#allocation5 + $0x768] sm:$0xff]
        %v481 = vld [vmem:[#allocation5 + $0x770] sm:$0xff]
        %v482 = vld [vmem:[#allocation5 + $0x778] sm:$0xff]
        %v483 = vld [vmem:[#allocation5 + $0x780] sm:$0xff]
        %v484 = vld [vmem:[#allocation5 + $0x788] sm:$0xff]
        %v485 = vld [vmem:[#allocation5 + $0x790] sm:$0xff]
        %v486 = vld [vmem:[#allocation5 + $0x798] sm:$0xff]
        %v487 = vld [vmem:[#allocation5 + $0x7a0] sm:$0xff]
        %v488 = vld [vmem:[#allocation5 + $0x7a8] sm:$0xff]
        %v489 = vld [vmem:[#allocation5 + $0x7b0] sm:$0xff]
        %v490 = vld [vmem:[#allocation5 + $0x7b8] sm:$0xff]
        %v491 = vld [vmem:[#allocation5 + $0x7c0] sm:$0xff]
        %v492 = vld [vmem:[#allocation5 + $0x7c8] sm:$0xff]
        %v493 = vld [vmem:[#allocation5 + $0x7d0] sm:$0xff]
        %v494 = vld [vmem:[#allocation5 + $0x7d8] sm:$0xff]
        %v495 = vld [vmem:[#allocation5 + $0x7e0] sm:$0xff]
        %v496 = vld [vmem:[#allocation5 + $0x7e8] sm:$0xff]
        %v497 = vld [vmem:[#allocation5 + $0x7f0] sm:$0xff]
        %v498 = vld [vmem:[#allocation5 + $0x7f8] sm:$0xff]
        %v499 = vld [vmem:[#allocation5 + $0x800] sm:$0xff]
        %v500 = vld [vmem:[#allocation5 + $0x808] sm:$0xff]
        %v501 = vld [vmem:[#allocation5 + $0x810] sm:$0xff]
        %v502 = vld [vmem:[#allocation5 + $0x818] sm:$0xff]
        %v503 = vld [vmem:[#allocation5 + $0x820] sm:$0xff]
        %v504 = vld [vmem:[#allocation5 + $0x828] sm:$0xff]
        %v505 = vld [vmem:[#allocation5 + $0x830] sm:$0xff]
        %v506 = vld [vmem:[#allocation5 + $0x838] sm:$0xff]
        %v507 = vld [vmem:[#allocation5 + $0x840] sm:$0xff]
        %v508 = vld [vmem:[#allocation5 + $0x848] sm:$0xff]
        %v509 = vld [vmem:[#allocation5 + $0x850] sm:$0xff]
        %v510 = vld [vmem:[#allocation5 + $0x858] sm:$0xff]
        %v511 = vld [vmem:[#allocation5 + $0x860] sm:$0xff]
        %v512 = vld [vmem:[#allocation5 + $0x868] sm:$0xff]
        %v513 = vld [vmem:[#allocation5 + $0x870] sm:$0xff]
        %v514 = vld [vmem:[#allocation5 + $0x878] sm:$0xff]
        %v515 = vld [vmem:[#allocation5 + $0x880] sm:$0xff]
        %v516 = vld [vmem:[#allocation5 + $0x888] sm:$0xff]
        %v517 = vld [vmem:[#allocation5 + $0x890] sm:$0xff]
        %v518 = vld [vmem:[#allocation5 + $0x898] sm:$0xff]
        %v519 = vld [vmem:[#allocation5 + $0x8a0] sm:$0xff]
        %v520 = vld [vmem:[#allocation5 + $0x8a8] sm:$0xff]
        %v521 = vld [vmem:[#allocation5 + $0x8b0] sm:$0xff]
        %v522 = vld [vmem:[#allocation5 + $0x8b8] sm:$0xff]
        %v523 = vld [vmem:[#allocation5 + $0x8c0] sm:$0xff]
        %v524 = vld [vmem:[#allocation5 + $0x8c8] sm:$0xff]
        %v525 = vld [vmem:[#allocation5 + $0x8d0] sm:$0xff]
        %v526 = vld [vmem:[#allocation5 + $0x8d8] sm:$0xff]
        %v527 = vld [vmem:[#allocation5 + $0x8e0] sm:$0xff]
        %v528 = vld [vmem:[#allocation5 + $0x8e8] sm:$0xff]
        %v529 = vld [vmem:[#allocation5 + $0x8f0] sm:$0xff]
        %v530 = vld [vmem:[#allocation5 + $0x8f8] sm:$0xff]
        %v531 = vld [vmem:[#allocation7] sm:$0x3f]
        %v533 = vperm.slane %v531, 0
        %v534 = vperm.slane %v531, 1
        %v535 = vperm.slane %v531, 2
        %v536 = vperm.slane %v531, 3
        %v537 = vperm.slane %v531, 4
        %v538 = vperm.slane %v531, 5
        %v833 = vunpack.c.l.b16 %v243
        %v834 = vunpack.c.h.b16 %v243
        %v835 = vunpack.c.l.b16 %v244
        %v836 = vunpack.c.h.b16 %v244
        %v837 = vunpack.c.l.b16 %v245
        %v838 = vunpack.c.h.b16 %v245
        %v839 = vunpack.c.l.b16 %v246
        %v840 = vunpack.c.h.b16 %v246
        %v841 = vunpack.c.l.b16 %v247
        %v842 = vunpack.c.h.b16 %v247
        %v843 = vunpack.c.l.b16 %v248
        %v844 = vunpack.c.h.b16 %v248
        %v845 = vunpack.c.l.b16 %v249
        %v846 = vunpack.c.h.b16 %v249
        %v847 = vunpack.c.l.b16 %v250
        %v848 = vunpack.c.h.b16 %v250
        %v849 = vunpack.c.l.b16 %v251
        %v850 = vunpack.c.h.b16 %v251
        %v851 = vunpack.c.l.b16 %v252
        %v852 = vunpack.c.h.b16 %v252
        %v853 = vunpack.c.l.b16 %v253
        %v854 = vunpack.c.h.b16 %v253
        %v855 = vunpack.c.l.b16 %v254
        %v856 = vunpack.c.h.b16 %v254
        %v857 = vunpack.c.l.b16 %v255
        %v858 = vunpack.c.h.b16 %v255
        %v859 = vunpack.c.l.b16 %v256
        %v860 = vunpack.c.h.b16 %v256
        %v861 = vunpack.c.l.b16 %v257
        %v862 = vunpack.c.h.b16 %v257
        %v863 = vunpack.c.l.b16 %v258
        %v864 = vunpack.c.h.b16 %v258
        %v865 = vunpack.c.l.b16 %v259
        %v866 = vunpack.c.h.b16 %v259
        %v867 = vunpack.c.l.b16 %v260
        %v868 = vunpack.c.h.b16 %v260
        %v869 = vunpack.c.l.b16 %v261
        %v870 = vunpack.c.h.b16 %v261
        %v871 = vunpack.c.l.b16 %v262
        %v872 = vunpack.c.h.b16 %v262
        %v873 = vunpack.c.l.b16 %v263
        %v874 = vunpack.c.h.b16 %v263
        %v875 = vunpack.c.l.b16 %v264
        %v876 = vunpack.c.h.b16 %v264
        %v877 = vunpack.c.l.b16 %v265
        %v878 = vunpack.c.h.b16 %v265
        %v879 = vunpack.c.l.b16 %v266
        %v880 = vunpack.c.h.b16 %v266
        %v881 = vunpack.c.l.b16 %v267
        %v882 = vunpack.c.h.b16 %v267
        %v883 = vunpack.c.l.b16 %v268
        %v884 = vunpack.c.h.b16 %v268
        %v885 = vunpack.c.l.b16 %v269
        %v886 = vunpack.c.h.b16 %v269
        %v887 = vunpack.c.l.b16 %v270
        %v888 = vunpack.c.h.b16 %v270
        %v889 = vunpack.c.l.b16 %v271
        %v890 = vunpack.c.h.b16 %v271
        %v891 = vunpack.c.l.b16 %v272
        %v892 = vunpack.c.h.b16 %v272
        %v893 = vunpack.c.l.b16 %v273
        %v894 = vunpack.c.h.b16 %v273
        %v895 = vunpack.c.l.b16 %v274
        %v896 = vunpack.c.h.b16 %v274
        %v897 = vunpack.c.l.b16 %v275
        %v898 = vunpack.c.h.b16 %v275
        %v899 = vunpack.c.l.b16 %v276
        %v900 = vunpack.c.h.b16 %v276
        %v901 = vunpack.c.l.b16 %v277
        %v902 = vunpack.c.h.b16 %v277
        %v903 = vunpack.c.l.b16 %v278
        %v904 = vunpack.c.h.b16 %v278
        %v905 = vunpack.c.l.b16 %v279
        %v906 = vunpack.c.h.b16 %v279
        %v907 = vunpack.c.l.b16 %v280
        %v908 = vunpack.c.h.b16 %v280
        %v909 = vunpack.c.l.b16 %v281
        %v910 = vunpack.c.h.b16 %v281
        %v911 = vunpack.c.l.b16 %v282
        %v912 = vunpack.c.h.b16 %v282
        %v913 = vunpack.c.l.b16 %v283
        %v914 = vunpack.c.h.b16 %v283
        %v915 = vunpack.c.l.b16 %v284
        %v916 = vunpack.c.h.b16 %v284
        %v917 = vunpack.c.l.b16 %v285
        %v918 = vunpack.c.h.b16 %v285
        %v919 = vunpack.c.l.b16 %v286
        %v920 = vunpack.c.h.b16 %v286
        %v921 = vunpack.c.l.b16 %v287
        %v922 = vunpack.c.h.b16 %v287
        %v923 = vunpack.c.l.b16 %v288
        %v924 = vunpack.c.h.b16 %v288
        %v925 = vunpack.c.l.b16 %v289
        %v926 = vunpack.c.h.b16 %v289
        %v927 = vunpack.c.l.b16 %v290
        %v928 = vunpack.c.h.b16 %v290
        %v929 = vunpack.c.l.b16 %v291
        %v930 = vunpack.c.h.b16 %v291
        %v931 = vunpack.c.l.b16 %v292
        %v932 = vunpack.c.h.b16 %v292
        %v933 = vunpack.c.l.b16 %v293
        %v934 = vunpack.c.h.b16 %v293
        %v935 = vunpack.c.l.b16 %v294
        %v936 = vunpack.c.h.b16 %v294
        %v937 = vunpack.c.l.b16 %v295
        %v938 = vunpack.c.h.b16 %v295
        %v939 = vunpack.c.l.b16 %v296
        %v940 = vunpack.c.h.b16 %v296
        %v941 = vunpack.c.l.b16 %v297
        %v942 = vunpack.c.h.b16 %v297
        %v943 = vunpack.c.l.b16 %v298
        %v944 = vunpack.c.h.b16 %v298
        %v945 = vunpack.c.l.b16 %v299
        %v946 = vunpack.c.h.b16 %v299
        %v947 = vunpack.c.l.b16 %v300
        %v948 = vunpack.c.h.b16 %v300
        %v949 = vunpack.c.l.b16 %v301
        %v950 = vunpack.c.h.b16 %v301
        %v951 = vunpack.c.l.b16 %v302
        %v952 = vunpack.c.h.b16 %v302
        %v953 = vunpack.c.l.b16 %v303
        %v954 = vunpack.c.h.b16 %v303
        %v955 = vunpack.c.l.b16 %v304
        %v956 = vunpack.c.h.b16 %v304
        %v957 = vunpack.c.l.b16 %v305
        %v958 = vunpack.c.h.b16 %v305
        %v959 = vunpack.c.l.b16 %v306
        %v960 = vunpack.c.h.b16 %v306
        %v961 = vunpack.c.l.b16 %v307
        %v962 = vunpack.c.h.b16 %v307
        %v963 = vunpack.c.l.b16 %v308
        %v964 = vunpack.c.h.b16 %v308
        %v965 = vunpack.c.l.b16 %v309
        %v966 = vunpack.c.h.b16 %v309
        %v967 = vunpack.c.l.b16 %v310
        %v968 = vunpack.c.h.b16 %v310
        %v969 = vunpack.c.l.b16 %v311
        %v970 = vunpack.c.h.b16 %v311
        %v971 = vunpack.c.l.b16 %v312
        %v972 = vunpack.c.h.b16 %v312
        %v973 = vunpack.c.l.b16 %v313
        %v974 = vunpack.c.h.b16 %v313
        %v975 = vunpack.c.l.b16 %v314
        %v976 = vunpack.c.h.b16 %v314
        %v977 = vunpack.c.l.b16 %v315
        %v978 = vunpack.c.h.b16 %v315
        %v979 = vunpack.c.l.b16 %v316
        %v980 = vunpack.c.h.b16 %v316
        %v981 = vunpack.c.l.b16 %v317
        %v982 = vunpack.c.h.b16 %v317
        %v983 = vunpack.c.l.b16 %v318
        %v984 = vunpack.c.h.b16 %v318
        %v985 = vunpack.c.l.b16 %v319
        %v986 = vunpack.c.h.b16 %v319
        %v987 = vunpack.c.l.b16 %v320
        %v988 = vunpack.c.h.b16 %v320
        %v989 = vunpack.c.l.b16 %v321
        %v990 = vunpack.c.h.b16 %v321
        %v991 = vunpack.c.l.b16 %v322
        %v992 = vunpack.c.h.b16 %v322
        %v993 = vunpack.c.l.b16 %v323
        %v994 = vunpack.c.h.b16 %v323
        %v995 = vunpack.c.l.b16 %v324
        %v996 = vunpack.c.h.b16 %v324
        %v997 = vunpack.c.l.b16 %v325
        %v998 = vunpack.c.h.b16 %v325
        %v999 = vunpack.c.l.b16 %v326
        %v1000 = vunpack.c.h.b16 %v326
        %v1001 = vunpack.c.l.b16 %v327
        %v1002 = vunpack.c.h.b16 %v327
        %v1003 = vunpack.c.l.b16 %v328
        %v1004 = vunpack.c.h.b16 %v328
        %v1005 = vunpack.c.l.b16 %v329
        %v1006 = vunpack.c.h.b16 %v329
        %v1007 = vunpack.c.l.b16 %v330
        %v1008 = vunpack.c.h.b16 %v330
        %v1009 = vunpack.c.l.b16 %v331
        %v1010 = vunpack.c.h.b16 %v331
        %v1011 = vunpack.c.l.b16 %v332
        %v1012 = vunpack.c.h.b16 %v332
        %v1013 = vunpack.c.l.b16 %v333
        %v1014 = vunpack.c.h.b16 %v333
        %v1015 = vunpack.c.l.b16 %v334
        %v1016 = vunpack.c.h.b16 %v334
        %v1017 = vunpack.c.l.b16 %v335
        %v1018 = vunpack.c.h.b16 %v335
        %v1019 = vunpack.c.l.b16 %v336
        %v1020 = vunpack.c.h.b16 %v336
        %v1021 = vunpack.c.l.b16 %v337
        %v1022 = vunpack.c.h.b16 %v337
        %v1023 = vunpack.c.l.b16 %v338
        %v1024 = vunpack.c.h.b16 %v338
        %v1025 = vunpack.c.l.b16 %v339
        %v1026 = vunpack.c.h.b16 %v339
        %v1027 = vunpack.c.l.b16 %v340
        %v1028 = vunpack.c.h.b16 %v340
        %v1029 = vunpack.c.l.b16 %v341
        %v1030 = vunpack.c.h.b16 %v341
        %v1031 = vunpack.c.l.b16 %v342
        %v1032 = vunpack.c.h.b16 %v342
        %v1033 = vunpack.c.l.b16 %v343
        %v1034 = vunpack.c.h.b16 %v343
        %v1035 = vunpack.c.l.b16 %v344
        %v1036 = vunpack.c.h.b16 %v344
        %v1037 = vunpack.c.l.b16 %v345
        %v1038 = vunpack.c.h.b16 %v345
        %v1039 = vunpack.c.l.b16 %v346
        %v1040 = vunpack.c.h.b16 %v346
        %v1041 = vunpack.c.l.b16 %v347
        %v1042 = vunpack.c.h.b16 %v347
        %v1043 = vunpack.c.l.b16 %v348
        %v1044 = vunpack.c.h.b16 %v348
        %v1045 = vunpack.c.l.b16 %v349
        %v1046 = vunpack.c.h.b16 %v349
        %v1047 = vunpack.c.l.b16 %v350
        %v1048 = vunpack.c.h.b16 %v350
        %v1049 = vunpack.c.l.b16 %v351
        %v1050 = vunpack.c.h.b16 %v351
        %v1051 = vunpack.c.l.b16 %v352
        %v1052 = vunpack.c.h.b16 %v352
        %v1053 = vunpack.c.l.b16 %v353
        %v1054 = vunpack.c.h.b16 %v353
        %v1055 = vunpack.c.l.b16 %v354
        %v1056 = vunpack.c.h.b16 %v354
        %v1057 = vunpack.c.l.b16 %v355
        %v1058 = vunpack.c.h.b16 %v355
        %v1059 = vunpack.c.l.b16 %v356
        %v1060 = vunpack.c.h.b16 %v356
        %v1061 = vunpack.c.l.b16 %v357
        %v1062 = vunpack.c.h.b16 %v357
        %v1063 = vunpack.c.l.b16 %v358
        %v1064 = vunpack.c.h.b16 %v358
        %v1065 = vunpack.c.l.b16 %v359
        %v1066 = vunpack.c.h.b16 %v359
        %v1067 = vunpack.c.l.b16 %v360
        %v1068 = vunpack.c.h.b16 %v360
        %v1069 = vunpack.c.l.b16 %v361
        %v1070 = vunpack.c.h.b16 %v361
        %v1071 = vunpack.c.l.b16 %v362
        %v1072 = vunpack.c.h.b16 %v362
        %v1073 = vunpack.c.l.b16 %v363
        %v1074 = vunpack.c.h.b16 %v363
        %v1075 = vunpack.c.l.b16 %v364
        %v1076 = vunpack.c.h.b16 %v364
        %v1077 = vunpack.c.l.b16 %v365
        %v1078 = vunpack.c.h.b16 %v365
        %v1079 = vunpack.c.l.b16 %v366
        %v1080 = vunpack.c.h.b16 %v366
        %v1081 = vunpack.c.l.b16 %v367
        %v1082 = vunpack.c.h.b16 %v367
        %v1083 = vunpack.c.l.b16 %v368
        %v1084 = vunpack.c.h.b16 %v368
        %v1085 = vunpack.c.l.b16 %v369
        %v1086 = vunpack.c.h.b16 %v369
        %v1087 = vunpack.c.l.b16 %v370
        %v1088 = vunpack.c.h.b16 %v370
        %v1089 = vunpack.c.l.b16 %v371
        %v1090 = vunpack.c.h.b16 %v371
        %v1091 = vunpack.c.l.b16 %v372
        %v1092 = vunpack.c.h.b16 %v372
        %v1093 = vunpack.c.l.b16 %v373
        %v1094 = vunpack.c.h.b16 %v373
        %v1095 = vunpack.c.l.b16 %v374
        %v1096 = vunpack.c.h.b16 %v374
        %v1097 = vunpack.c.l.b16 %v375
        %v1098 = vunpack.c.h.b16 %v375
        %v1099 = vunpack.c.l.b16 %v376
        %v1100 = vunpack.c.h.b16 %v376
        %v1101 = vunpack.c.l.b16 %v377
        %v1102 = vunpack.c.h.b16 %v377
        %v1103 = vunpack.c.l.b16 %v378
        %v1104 = vunpack.c.h.b16 %v378
        %v1105 = vunpack.c.l.b16 %v379
        %v1106 = vunpack.c.h.b16 %v379
        %v1107 = vunpack.c.l.b16 %v380
        %v1108 = vunpack.c.h.b16 %v380
        %v1109 = vunpack.c.l.b16 %v381
        %v1110 = vunpack.c.h.b16 %v381
        %v1111 = vunpack.c.l.b16 %v382
        %v1112 = vunpack.c.h.b16 %v382
        %v1113 = vunpack.c.l.b16 %v383
        %v1114 = vunpack.c.h.b16 %v383
        %v1115 = vunpack.c.l.b16 %v384
        %v1116 = vunpack.c.h.b16 %v384
        %v1117 = vunpack.c.l.b16 %v385
        %v1118 = vunpack.c.h.b16 %v385
        %v1119 = vunpack.c.l.b16 %v386
        %v1120 = vunpack.c.h.b16 %v386
        %v1121 = vunpack.c.l.b16 %v387
        %v1122 = vunpack.c.h.b16 %v387
        %v1123 = vunpack.c.l.b16 %v388
        %v1124 = vunpack.c.h.b16 %v388
        %v1125 = vunpack.c.l.b16 %v389
        %v1126 = vunpack.c.h.b16 %v389
        %v1127 = vunpack.c.l.b16 %v390
        %v1128 = vunpack.c.h.b16 %v390
        %v1129 = vunpack.c.l.b16 %v391
        %v1130 = vunpack.c.h.b16 %v391
        %v1131 = vunpack.c.l.b16 %v392
        %v1132 = vunpack.c.h.b16 %v392
        %v1133 = vunpack.c.l.b16 %v393
        %v1134 = vunpack.c.h.b16 %v393
        %v1135 = vunpack.c.l.b16 %v394
        %v1136 = vunpack.c.h.b16 %v394
        %v1137 = vunpack.c.l.b16 %v395
        %v1138 = vunpack.c.h.b16 %v395
        %v1139 = vunpack.c.l.b16 %v396
        %v1140 = vunpack.c.h.b16 %v396
        %v1141 = vunpack.c.l.b16 %v397
        %v1142 = vunpack.c.h.b16 %v397
        %v1143 = vunpack.c.l.b16 %v398
        %v1144 = vunpack.c.h.b16 %v398
        %v1145 = vunpack.c.l.b16 %v399
        %v1146 = vunpack.c.h.b16 %v399
        %v1147 = vunpack.c.l.b16 %v400
        %v1148 = vunpack.c.h.b16 %v400
        %v1149 = vunpack.c.l.b16 %v401
        %v1150 = vunpack.c.h.b16 %v401
        %v1151 = vunpack.c.l.b16 %v402
        %v1152 = vunpack.c.h.b16 %v402
        %v1153 = vunpack.c.l.b16 %v403
        %v1154 = vunpack.c.h.b16 %v403
        %v1155 = vunpack.c.l.b16 %v404
        %v1156 = vunpack.c.h.b16 %v404
        %v1157 = vunpack.c.l.b16 %v405
        %v1158 = vunpack.c.h.b16 %v405
        %v1159 = vunpack.c.l.b16 %v406
        %v1160 = vunpack.c.h.b16 %v406
        %v1161 = vunpack.c.l.b16 %v407
        %v1162 = vunpack.c.h.b16 %v407
        %v1163 = vunpack.c.l.b16 %v408
        %v1164 = vunpack.c.h.b16 %v408
        %v1165 = vunpack.c.l.b16 %v409
        %v1166 = vunpack.c.h.b16 %v409
        %v1167 = vunpack.c.l.b16 %v410
        %v1168 = vunpack.c.h.b16 %v410
        %v1169 = vunpack.c.l.b16 %v411
        %v1170 = vunpack.c.h.b16 %v411
        %v1171 = vunpack.c.l.b16 %v412
        %v1172 = vunpack.c.h.b16 %v412
        %v1173 = vunpack.c.l.b16 %v413
        %v1174 = vunpack.c.h.b16 %v413
        %v1175 = vunpack.c.l.b16 %v414
        %v1176 = vunpack.c.h.b16 %v414
        %v1177 = vunpack.c.l.b16 %v415
        %v1178 = vunpack.c.h.b16 %v415
        %v1179 = vunpack.c.l.b16 %v416
        %v1180 = vunpack.c.h.b16 %v416
        %v1181 = vunpack.c.l.b16 %v417
        %v1182 = vunpack.c.h.b16 %v417
        %v1183 = vunpack.c.l.b16 %v418
        %v1184 = vunpack.c.h.b16 %v418
        %v1185 = vunpack.c.l.b16 %v419
        %v1186 = vunpack.c.h.b16 %v419
        %v1187 = vunpack.c.l.b16 %v420
        %v1188 = vunpack.c.h.b16 %v420
        %v1189 = vunpack.c.l.b16 %v421
        %v1190 = vunpack.c.h.b16 %v421
        %v1191 = vunpack.c.l.b16 %v422
        %v1192 = vunpack.c.h.b16 %v422
        %v1193 = vunpack.c.l.b16 %v423
        %v1194 = vunpack.c.h.b16 %v423
        %v1195 = vunpack.c.l.b16 %v424
        %v1196 = vunpack.c.h.b16 %v424
        %v1197 = vunpack.c.l.b16 %v425
        %v1198 = vunpack.c.h.b16 %v425
        %v1199 = vunpack.c.l.b16 %v426
        %v1200 = vunpack.c.h.b16 %v426
        %v1201 = vunpack.c.l.b16 %v427
        %v1202 = vunpack.c.h.b16 %v427
        %v1203 = vunpack.c.l.b16 %v428
        %v1204 = vunpack.c.h.b16 %v428
        %v1205 = vunpack.c.l.b16 %v429
        %v1206 = vunpack.c.h.b16 %v429
        %v1207 = vunpack.c.l.b16 %v430
        %v1208 = vunpack.c.h.b16 %v430
        %v1209 = vunpack.c.l.b16 %v431
        %v1210 = vunpack.c.h.b16 %v431
        %v1211 = vunpack.c.l.b16 %v432
        %v1212 = vunpack.c.h.b16 %v432
        %v1213 = vunpack.c.l.b16 %v433
        %v1214 = vunpack.c.h.b16 %v433
        %v1215 = vunpack.c.l.b16 %v434
        %v1216 = vunpack.c.h.b16 %v434
        %v1217 = vunpack.c.l.b16 %v435
        %v1218 = vunpack.c.h.b16 %v435
        %v1219 = vunpack.c.l.b16 %v436
        %v1220 = vunpack.c.h.b16 %v436
        %v1221 = vunpack.c.l.b16 %v437
        %v1222 = vunpack.c.h.b16 %v437
        %v1223 = vunpack.c.l.b16 %v438
        %v1224 = vunpack.c.h.b16 %v438
        %v1225 = vunpack.c.l.b16 %v439
        %v1226 = vunpack.c.h.b16 %v439
        %v1227 = vunpack.c.l.b16 %v440
        %v1228 = vunpack.c.h.b16 %v440
        %v1229 = vunpack.c.l.b16 %v441
        %v1230 = vunpack.c.h.b16 %v441
        %v1231 = vunpack.c.l.b16 %v442
        %v1232 = vunpack.c.h.b16 %v442
        %v1233 = vunpack.c.l.b16 %v443
        %v1234 = vunpack.c.h.b16 %v443
        %v1235 = vunpack.c.l.b16 %v444
        %v1236 = vunpack.c.h.b16 %v444
        %v1237 = vunpack.c.l.b16 %v445
        %v1238 = vunpack.c.h.b16 %v445
        %v1239 = vunpack.c.l.b16 %v446
        %v1240 = vunpack.c.h.b16 %v446
        %v1241 = vunpack.c.l.b16 %v447
        %v1242 = vunpack.c.h.b16 %v447
        %v1243 = vunpack.c.l.b16 %v448
        %v1244 = vunpack.c.h.b16 %v448
        %v1245 = vunpack.c.l.b16 %v449
        %v1246 = vunpack.c.h.b16 %v449
        %v1247 = vunpack.c.l.b16 %v450
        %v1248 = vunpack.c.h.b16 %v450
        %v1249 = vunpack.c.l.b16 %v451
        %v1250 = vunpack.c.h.b16 %v451
        %v1251 = vunpack.c.l.b16 %v452
        %v1252 = vunpack.c.h.b16 %v452
        %v1253 = vunpack.c.l.b16 %v453
        %v1254 = vunpack.c.h.b16 %v453
        %v1255 = vunpack.c.l.b16 %v454
        %v1256 = vunpack.c.h.b16 %v454
        %v1257 = vunpack.c.l.b16 %v455
        %v1258 = vunpack.c.h.b16 %v455
        %v1259 = vunpack.c.l.b16 %v456
        %v1260 = vunpack.c.h.b16 %v456
        %v1261 = vunpack.c.l.b16 %v457
        %v1262 = vunpack.c.h.b16 %v457
        %v1263 = vunpack.c.l.b16 %v458
        %v1264 = vunpack.c.h.b16 %v458
        %v1265 = vunpack.c.l.b16 %v459
        %v1266 = vunpack.c.h.b16 %v459
        %v1267 = vunpack.c.l.b16 %v460
        %v1268 = vunpack.c.h.b16 %v460
        %v1269 = vunpack.c.l.b16 %v461
        %v1270 = vunpack.c.h.b16 %v461
        %v1271 = vunpack.c.l.b16 %v462
        %v1272 = vunpack.c.h.b16 %v462
        %v1273 = vunpack.c.l.b16 %v463
        %v1274 = vunpack.c.h.b16 %v463
        %v1275 = vunpack.c.l.b16 %v464
        %v1276 = vunpack.c.h.b16 %v464
        %v1277 = vunpack.c.l.b16 %v465
        %v1278 = vunpack.c.h.b16 %v465
        %v1279 = vunpack.c.l.b16 %v466
        %v1280 = vunpack.c.h.b16 %v466
        %v1281 = vunpack.c.l.b16 %v467
        %v1282 = vunpack.c.h.b16 %v467
        %v1283 = vunpack.c.l.b16 %v468
        %v1284 = vunpack.c.h.b16 %v468
        %v1285 = vunpack.c.l.b16 %v469
        %v1286 = vunpack.c.h.b16 %v469
        %v1287 = vunpack.c.l.b16 %v470
        %v1288 = vunpack.c.h.b16 %v470
        %v1289 = vunpack.c.l.b16 %v471
        %v1290 = vunpack.c.h.b16 %v471
        %v1291 = vunpack.c.l.b16 %v472
        %v1292 = vunpack.c.h.b16 %v472
        %v1293 = vunpack.c.l.b16 %v473
        %v1294 = vunpack.c.h.b16 %v473
        %v1295 = vunpack.c.l.b16 %v474
        %v1296 = vunpack.c.h.b16 %v474
        %v1297 = vunpack.c.l.b16 %v475
        %v1298 = vunpack.c.h.b16 %v475
        %v1299 = vunpack.c.l.b16 %v476
        %v1300 = vunpack.c.h.b16 %v476
        %v1301 = vunpack.c.l.b16 %v477
        %v1302 = vunpack.c.h.b16 %v477
        %v1303 = vunpack.c.l.b16 %v478
        %v1304 = vunpack.c.h.b16 %v478
        %v1305 = vunpack.c.l.b16 %v479
        %v1306 = vunpack.c.h.b16 %v479
        %v1307 = vunpack.c.l.b16 %v480
        %v1308 = vunpack.c.h.b16 %v480
        %v1309 = vunpack.c.l.b16 %v481
        %v1310 = vunpack.c.h.b16 %v481
        %v1311 = vunpack.c.l.b16 %v482
        %v1312 = vunpack.c.h.b16 %v482
        %v1313 = vunpack.c.l.b16 %v483
        %v1314 = vunpack.c.h.b16 %v483
        %v1315 = vunpack.c.l.b16 %v484
        %v1316 = vunpack.c.h.b16 %v484
        %v1317 = vunpack.c.l.b16 %v485
        %v1318 = vunpack.c.h.b16 %v485
        %v1319 = vunpack.c.l.b16 %v486
        %v1320 = vunpack.c.h.b16 %v486
        %v1321 = vunpack.c.l.b16 %v487
        %v1322 = vunpack.c.h.b16 %v487
        %v1323 = vunpack.c.l.b16 %v488
        %v1324 = vunpack.c.h.b16 %v488
        %v1325 = vunpack.c.l.b16 %v489
        %v1326 = vunpack.c.h.b16 %v489
        %v1327 = vunpack.c.l.b16 %v490
        %v1328 = vunpack.c.h.b16 %v490
        %v1329 = vunpack.c.l.b16 %v491
        %v1330 = vunpack.c.h.b16 %v491
        %v1331 = vunpack.c.l.b16 %v492
        %v1332 = vunpack.c.h.b16 %v492
        %v1333 = vunpack.c.l.b16 %v493
        %v1334 = vunpack.c.h.b16 %v493
        %v1335 = vunpack.c.l.b16 %v494
        %v1336 = vunpack.c.h.b16 %v494
        %v1337 = vunpack.c.l.b16 %v495
        %v1338 = vunpack.c.h.b16 %v495
        %v1339 = vunpack.c.l.b16 %v496
        %v1340 = vunpack.c.h.b16 %v496
        %v1341 = vunpack.c.l.b16 %v497
        %v1342 = vunpack.c.h.b16 %v497
        %v1343 = vunpack.c.l.b16 %v498
        %v1344 = vunpack.c.h.b16 %v498
        %v1345 = vunpack.c.l.b16 %v499
        %v1346 = vunpack.c.h.b16 %v499
        %v1347 = vunpack.c.l.b16 %v500
        %v1348 = vunpack.c.h.b16 %v500
        %v1349 = vunpack.c.l.b16 %v501
        %v1350 = vunpack.c.h.b16 %v501
        %v1351 = vunpack.c.l.b16 %v502
        %v1352 = vunpack.c.h.b16 %v502
        %v1353 = vunpack.c.l.b16 %v503
        %v1354 = vunpack.c.h.b16 %v503
        %v1355 = vunpack.c.l.b16 %v504
        %v1356 = vunpack.c.h.b16 %v504
        %v1357 = vunpack.c.l.b16 %v505
        %v1358 = vunpack.c.h.b16 %v505
        %v1359 = vunpack.c.l.b16 %v506
        %v1360 = vunpack.c.h.b16 %v506
        %v1361 = vunpack.c.l.b16 %v507
        %v1362 = vunpack.c.h.b16 %v507
        %v1363 = vunpack.c.l.b16 %v508
        %v1364 = vunpack.c.h.b16 %v508
        %v1365 = vunpack.c.l.b16 %v509
        %v1366 = vunpack.c.h.b16 %v509
        %v1367 = vunpack.c.l.b16 %v510
        %v1368 = vunpack.c.h.b16 %v510
        %v1369 = vunpack.c.l.b16 %v511
        %v1370 = vunpack.c.h.b16 %v511
        %v1371 = vunpack.c.l.b16 %v512
        %v1372 = vunpack.c.h.b16 %v512
        %v1373 = vunpack.c.l.b16 %v513
        %v1374 = vunpack.c.h.b16 %v513
        %v1375 = vunpack.c.l.b16 %v514
        %v1376 = vunpack.c.h.b16 %v514
        %v1377 = vunpack.c.l.b16 %v515
        %v1378 = vunpack.c.h.b16 %v515
        %v1379 = vunpack.c.l.b16 %v516
        %v1380 = vunpack.c.h.b16 %v516
        %v1381 = vunpack.c.l.b16 %v517
        %v1382 = vunpack.c.h.b16 %v517
        %v1383 = vunpack.c.l.b16 %v518
        %v1384 = vunpack.c.h.b16 %v518
        %v1385 = vunpack.c.l.b16 %v519
        %v1386 = vunpack.c.h.b16 %v519
        %v1387 = vunpack.c.l.b16 %v520
        %v1388 = vunpack.c.h.b16 %v520
        %v1389 = vunpack.c.l.b16 %v521
        %v1390 = vunpack.c.h.b16 %v521
        %v1391 = vunpack.c.l.b16 %v522
        %v1392 = vunpack.c.h.b16 %v522
        %v1393 = vunpack.c.l.b16 %v523
        %v1394 = vunpack.c.h.b16 %v523
        %v1395 = vunpack.c.l.b16 %v524
        %v1396 = vunpack.c.h.b16 %v524
        %v1397 = vunpack.c.l.b16 %v525
        %v1398 = vunpack.c.h.b16 %v525
        %v1399 = vunpack.c.l.b16 %v526
        %v1400 = vunpack.c.h.b16 %v526
        %v1401 = vunpack.c.l.b16 %v527
        %v1402 = vunpack.c.h.b16 %v527
        %v1403 = vunpack.c.l.b16 %v528
        %v1404 = vunpack.c.h.b16 %v528
        %v1405 = vunpack.c.l.b16 %v529
        %v1406 = vunpack.c.h.b16 %v529
        %v1407 = vunpack.c.l.b16 %v530
        %v1408 = vunpack.c.h.b16 %v530
        %v1409 = vpack.c.b16 %v839, %v833
        %v1410 = vpack.c.b16 %v840, %v834
        %v1411 = vpack.c.b16 %v841, %v835
        %v1412 = vpack.c.b16 %v842, %v836
        %v1413 = vpack.c.b16 %v843, %v837
        %v1414 = vpack.c.b16 %v844, %v838
        %v1415 = vpack.c.b16 %v851, %v845
        %v1416 = vpack.c.b16 %v852, %v846
        %v1417 = vpack.c.b16 %v853, %v847
        %v1418 = vpack.c.b16 %v854, %v848
        %v1419 = vpack.c.b16 %v855, %v849
        %v1420 = vpack.c.b16 %v856, %v850
        %v1421 = vpack.c.b16 %v863, %v857
        %v1422 = vpack.c.b16 %v864, %v858
        %v1423 = vpack.c.b16 %v865, %v859
        %v1424 = vpack.c.b16 %v866, %v860
        %v1425 = vpack.c.b16 %v867, %v861
        %v1426 = vpack.c.b16 %v868, %v862
        %v1427 = vpack.c.b16 %v875, %v869
        %v1428 = vpack.c.b16 %v876, %v870
        %v1429 = vpack.c.b16 %v877, %v871
        %v1430 = vpack.c.b16 %v878, %v872
        %v1431 = vpack.c.b16 %v879, %v873
        %v1432 = vpack.c.b16 %v880, %v874
        %v1433 = vpack.c.b16 %v887, %v881
        %v1434 = vpack.c.b16 %v888, %v882
        %v1435 = vpack.c.b16 %v889, %v883
        %v1436 = vpack.c.b16 %v890, %v884
        %v1437 = vpack.c.b16 %v891, %v885
        %v1438 = vpack.c.b16 %v892, %v886
        %v1439 = vpack.c.b16 %v899, %v893
        %v1440 = vpack.c.b16 %v900, %v894
        %v1441 = vpack.c.b16 %v901, %v895
        %v1442 = vpack.c.b16 %v902, %v896
        %v1443 = vpack.c.b16 %v903, %v897
        %v1444 = vpack.c.b16 %v904, %v898
        %v1445 = vpack.c.b16 %v911, %v905
        %v1446 = vpack.c.b16 %v912, %v906
        %v1447 = vpack.c.b16 %v913, %v907
        %v1448 = vpack.c.b16 %v914, %v908
        %v1449 = vpack.c.b16 %v915, %v909
        %v1450 = vpack.c.b16 %v916, %v910
        %v1451 = vpack.c.b16 %v923, %v917
        %v1452 = vpack.c.b16 %v924, %v918
        %v1453 = vpack.c.b16 %v925, %v919
        %v1454 = vpack.c.b16 %v926, %v920
        %v1455 = vpack.c.b16 %v927, %v921
        %v1456 = vpack.c.b16 %v928, %v922
        %v1457 = vpack.c.b16 %v935, %v929
        %v1458 = vpack.c.b16 %v936, %v930
        %v1459 = vpack.c.b16 %v937, %v931
        %v1460 = vpack.c.b16 %v938, %v932
        %v1461 = vpack.c.b16 %v939, %v933
        %v1462 = vpack.c.b16 %v940, %v934
        %v1463 = vpack.c.b16 %v947, %v941
        %v1464 = vpack.c.b16 %v948, %v942
        %v1465 = vpack.c.b16 %v949, %v943
        %v1466 = vpack.c.b16 %v950, %v944
        %v1467 = vpack.c.b16 %v951, %v945
        %v1468 = vpack.c.b16 %v952, %v946
        %v1469 = vpack.c.b16 %v959, %v953
        %v1470 = vpack.c.b16 %v960, %v954
        %v1471 = vpack.c.b16 %v961, %v955
        %v1472 = vpack.c.b16 %v962, %v956
        %v1473 = vpack.c.b16 %v963, %v957
        %v1474 = vpack.c.b16 %v964, %v958
        %v1475 = vpack.c.b16 %v971, %v965
        %v1476 = vpack.c.b16 %v972, %v966
        %v1477 = vpack.c.b16 %v973, %v967
        %v1478 = vpack.c.b16 %v974, %v968
        %v1479 = vpack.c.b16 %v975, %v969
        %v1480 = vpack.c.b16 %v976, %v970
        %v1481 = vpack.c.b16 %v983, %v977
        %v1482 = vpack.c.b16 %v984, %v978
        %v1483 = vpack.c.b16 %v985, %v979
        %v1484 = vpack.c.b16 %v986, %v980
        %v1485 = vpack.c.b16 %v987, %v981
        %v1486 = vpack.c.b16 %v988, %v982
        %v1487 = vpack.c.b16 %v995, %v989
        %v1488 = vpack.c.b16 %v996, %v990
        %v1489 = vpack.c.b16 %v997, %v991
        %v1490 = vpack.c.b16 %v998, %v992
        %v1491 = vpack.c.b16 %v999, %v993
        %v1492 = vpack.c.b16 %v1000, %v994
        %v1493 = vpack.c.b16 %v1007, %v1001
        %v1494 = vpack.c.b16 %v1008, %v1002
        %v1495 = vpack.c.b16 %v1009, %v1003
        %v1496 = vpack.c.b16 %v1010, %v1004
        %v1497 = vpack.c.b16 %v1011, %v1005
        %v1498 = vpack.c.b16 %v1012, %v1006
        %v1499 = vpack.c.b16 %v1019, %v1013
        %v1500 = vpack.c.b16 %v1020, %v1014
        %v1501 = vpack.c.b16 %v1021, %v1015
        %v1502 = vpack.c.b16 %v1022, %v1016
        %v1503 = vpack.c.b16 %v1023, %v1017
        %v1504 = vpack.c.b16 %v1024, %v1018
        %v1505 = vpack.c.b16 %v1031, %v1025
        %v1506 = vpack.c.b16 %v1032, %v1026
        %v1507 = vpack.c.b16 %v1033, %v1027
        %v1508 = vpack.c.b16 %v1034, %v1028
        %v1509 = vpack.c.b16 %v1035, %v1029
        %v1510 = vpack.c.b16 %v1036, %v1030
        %v1511 = vpack.c.b16 %v1043, %v1037
        %v1512 = vpack.c.b16 %v1044, %v1038
        %v1513 = vpack.c.b16 %v1045, %v1039
        %v1514 = vpack.c.b16 %v1046, %v1040
        %v1515 = vpack.c.b16 %v1047, %v1041
        %v1516 = vpack.c.b16 %v1048, %v1042
        %v1517 = vpack.c.b16 %v1055, %v1049
        %v1518 = vpack.c.b16 %v1056, %v1050
        %v1519 = vpack.c.b16 %v1057, %v1051
        %v1520 = vpack.c.b16 %v1058, %v1052
        %v1521 = vpack.c.b16 %v1059, %v1053
        %v1522 = vpack.c.b16 %v1060, %v1054
        %v1523 = vpack.c.b16 %v1067, %v1061
        %v1524 = vpack.c.b16 %v1068, %v1062
        %v1525 = vpack.c.b16 %v1069, %v1063
        %v1526 = vpack.c.b16 %v1070, %v1064
        %v1527 = vpack.c.b16 %v1071, %v1065
        %v1528 = vpack.c.b16 %v1072, %v1066
        %v1529 = vpack.c.b16 %v1079, %v1073
        %v1530 = vpack.c.b16 %v1080, %v1074
        %v1531 = vpack.c.b16 %v1081, %v1075
        %v1532 = vpack.c.b16 %v1082, %v1076
        %v1533 = vpack.c.b16 %v1083, %v1077
        %v1534 = vpack.c.b16 %v1084, %v1078
        %v1535 = vpack.c.b16 %v1091, %v1085
        %v1536 = vpack.c.b16 %v1092, %v1086
        %v1537 = vpack.c.b16 %v1093, %v1087
        %v1538 = vpack.c.b16 %v1094, %v1088
        %v1539 = vpack.c.b16 %v1095, %v1089
        %v1540 = vpack.c.b16 %v1096, %v1090
        %v1541 = vpack.c.b16 %v1103, %v1097
        %v1542 = vpack.c.b16 %v1104, %v1098
        %v1543 = vpack.c.b16 %v1105, %v1099
        %v1544 = vpack.c.b16 %v1106, %v1100
        %v1545 = vpack.c.b16 %v1107, %v1101
        %v1546 = vpack.c.b16 %v1108, %v1102
        %v1547 = vpack.c.b16 %v1115, %v1109
        %v1548 = vpack.c.b16 %v1116, %v1110
        %v1549 = vpack.c.b16 %v1117, %v1111
        %v1550 = vpack.c.b16 %v1118, %v1112
        %v1551 = vpack.c.b16 %v1119, %v1113
        %v1552 = vpack.c.b16 %v1120, %v1114
        %v1553 = vpack.c.b16 %v1127, %v1121
        %v1554 = vpack.c.b16 %v1128, %v1122
        %v1555 = vpack.c.b16 %v1129, %v1123
        %v1556 = vpack.c.b16 %v1130, %v1124
        %v1557 = vpack.c.b16 %v1131, %v1125
        %v1558 = vpack.c.b16 %v1132, %v1126
        %v1559 = vpack.c.b16 %v1139, %v1133
        %v1560 = vpack.c.b16 %v1140, %v1134
        %v1561 = vpack.c.b16 %v1141, %v1135
        %v1562 = vpack.c.b16 %v1142, %v1136
        %v1563 = vpack.c.b16 %v1143, %v1137
        %v1564 = vpack.c.b16 %v1144, %v1138
        %v1565 = vpack.c.b16 %v1151, %v1145
        %v1566 = vpack.c.b16 %v1152, %v1146
        %v1567 = vpack.c.b16 %v1153, %v1147
        %v1568 = vpack.c.b16 %v1154, %v1148
        %v1569 = vpack.c.b16 %v1155, %v1149
        %v1570 = vpack.c.b16 %v1156, %v1150
        %v1571 = vpack.c.b16 %v1163, %v1157
        %v1572 = vpack.c.b16 %v1164, %v1158
        %v1573 = vpack.c.b16 %v1165, %v1159
        %v1574 = vpack.c.b16 %v1166, %v1160
        %v1575 = vpack.c.b16 %v1167, %v1161
        %v1576 = vpack.c.b16 %v1168, %v1162
        %v1577 = vpack.c.b16 %v1175, %v1169
        %v1578 = vpack.c.b16 %v1176, %v1170
        %v1579 = vpack.c.b16 %v1177, %v1171
        %v1580 = vpack.c.b16 %v1178, %v1172
        %v1581 = vpack.c.b16 %v1179, %v1173
        %v1582 = vpack.c.b16 %v1180, %v1174
        %v1583 = vpack.c.b16 %v1187, %v1181
        %v1584 = vpack.c.b16 %v1188, %v1182
        %v1585 = vpack.c.b16 %v1189, %v1183
        %v1586 = vpack.c.b16 %v1190, %v1184
        %v1587 = vpack.c.b16 %v1191, %v1185
        %v1588 = vpack.c.b16 %v1192, %v1186
        %v1589 = vpack.c.b16 %v1199, %v1193
        %v1590 = vpack.c.b16 %v1200, %v1194
        %v1591 = vpack.c.b16 %v1201, %v1195
        %v1592 = vpack.c.b16 %v1202, %v1196
        %v1593 = vpack.c.b16 %v1203, %v1197
        %v1594 = vpack.c.b16 %v1204, %v1198
        %v1595 = vpack.c.b16 %v1211, %v1205
        %v1596 = vpack.c.b16 %v1212, %v1206
        %v1597 = vpack.c.b16 %v1213, %v1207
        %v1598 = vpack.c.b16 %v1214, %v1208
        %v1599 = vpack.c.b16 %v1215, %v1209
        %v1600 = vpack.c.b16 %v1216, %v1210
        %v1601 = vpack.c.b16 %v1223, %v1217
        %v1602 = vpack.c.b16 %v1224, %v1218
        %v1603 = vpack.c.b16 %v1225, %v1219
        %v1604 = vpack.c.b16 %v1226, %v1220
        %v1605 = vpack.c.b16 %v1227, %v1221
        %v1606 = vpack.c.b16 %v1228, %v1222
        %v1607 = vpack.c.b16 %v1235, %v1229
        %v1608 = vpack.c.b16 %v1236, %v1230
        %v1609 = vpack.c.b16 %v1237, %v1231
        %v1610 = vpack.c.b16 %v1238, %v1232
        %v1611 = vpack.c.b16 %v1239, %v1233
        %v1612 = vpack.c.b16 %v1240, %v1234
        %v1613 = vpack.c.b16 %v1247, %v1241
        %v1614 = vpack.c.b16 %v1248, %v1242
        %v1615 = vpack.c.b16 %v1249, %v1243
        %v1616 = vpack.c.b16 %v1250, %v1244
        %v1617 = vpack.c.b16 %v1251, %v1245
        %v1618 = vpack.c.b16 %v1252, %v1246
        %v1619 = vpack.c.b16 %v1259, %v1253
        %v1620 = vpack.c.b16 %v1260, %v1254
        %v1621 = vpack.c.b16 %v1261, %v1255
        %v1622 = vpack.c.b16 %v1262, %v1256
        %v1623 = vpack.c.b16 %v1263, %v1257
        %v1624 = vpack.c.b16 %v1264, %v1258
        %v1625 = vpack.c.b16 %v1271, %v1265
        %v1626 = vpack.c.b16 %v1272, %v1266
        %v1627 = vpack.c.b16 %v1273, %v1267
        %v1628 = vpack.c.b16 %v1274, %v1268
        %v1629 = vpack.c.b16 %v1275, %v1269
        %v1630 = vpack.c.b16 %v1276, %v1270
        %v1631 = vpack.c.b16 %v1283, %v1277
        %v1632 = vpack.c.b16 %v1284, %v1278
        %v1633 = vpack.c.b16 %v1285, %v1279
        %v1634 = vpack.c.b16 %v1286, %v1280
        %v1635 = vpack.c.b16 %v1287, %v1281
        %v1636 = vpack.c.b16 %v1288, %v1282
        %v1637 = vpack.c.b16 %v1295, %v1289
        %v1638 = vpack.c.b16 %v1296, %v1290
        %v1639 = vpack.c.b16 %v1297, %v1291
        %v1640 = vpack.c.b16 %v1298, %v1292
        %v1641 = vpack.c.b16 %v1299, %v1293
        %v1642 = vpack.c.b16 %v1300, %v1294
        %v1643 = vpack.c.b16 %v1307, %v1301
        %v1644 = vpack.c.b16 %v1308, %v1302
        %v1645 = vpack.c.b16 %v1309, %v1303
        %v1646 = vpack.c.b16 %v1310, %v1304
        %v1647 = vpack.c.b16 %v1311, %v1305
        %v1648 = vpack.c.b16 %v1312, %v1306
        %v1649 = vpack.c.b16 %v1319, %v1313
        %v1650 = vpack.c.b16 %v1320, %v1314
        %v1651 = vpack.c.b16 %v1321, %v1315
        %v1652 = vpack.c.b16 %v1322, %v1316
        %v1653 = vpack.c.b16 %v1323, %v1317
        %v1654 = vpack.c.b16 %v1324, %v1318
        %v1655 = vpack.c.b16 %v1331, %v1325
        %v1656 = vpack.c.b16 %v1332, %v1326
        %v1657 = vpack.c.b16 %v1333, %v1327
        %v1658 = vpack.c.b16 %v1334, %v1328
        %v1659 = vpack.c.b16 %v1335, %v1329
        %v1660 = vpack.c.b16 %v1336, %v1330
        %v1661 = vpack.c.b16 %v1343, %v1337
        %v1662 = vpack.c.b16 %v1344, %v1338
        %v1663 = vpack.c.b16 %v1345, %v1339
        %v1664 = vpack.c.b16 %v1346, %v1340
        %v1665 = vpack.c.b16 %v1347, %v1341
        %v1666 = vpack.c.b16 %v1348, %v1342
        %v1667 = vpack.c.b16 %v1355, %v1349
        %v1668 = vpack.c.b16 %v1356, %v1350
        %v1669 = vpack.c.b16 %v1357, %v1351
        %v1670 = vpack.c.b16 %v1358, %v1352
        %v1671 = vpack.c.b16 %v1359, %v1353
        %v1672 = vpack.c.b16 %v1360, %v1354
        %v1673 = vpack.c.b16 %v1367, %v1361
        %v1674 = vpack.c.b16 %v1368, %v1362
        %v1675 = vpack.c.b16 %v1369, %v1363
        %v1676 = vpack.c.b16 %v1370, %v1364
        %v1677 = vpack.c.b16 %v1371, %v1365
        %v1678 = vpack.c.b16 %v1372, %v1366
        %v1679 = vpack.c.b16 %v1379, %v1373
        %v1680 = vpack.c.b16 %v1380, %v1374
        %v1681 = vpack.c.b16 %v1381, %v1375
        %v1682 = vpack.c.b16 %v1382, %v1376
        %v1683 = vpack.c.b16 %v1383, %v1377
        %v1684 = vpack.c.b16 %v1384, %v1378
        %v1685 = vpack.c.b16 %v1391, %v1385
        %v1686 = vpack.c.b16 %v1392, %v1386
        %v1687 = vpack.c.b16 %v1393, %v1387
        %v1688 = vpack.c.b16 %v1394, %v1388
        %v1689 = vpack.c.b16 %v1395, %v1389
        %v1690 = vpack.c.b16 %v1396, %v1390
        %v1691 = vpack.c.b16 %v1403, %v1397
        %v1692 = vpack.c.b16 %v1404, %v1398
        %v1693 = vpack.c.b16 %v1405, %v1399
        %v1694 = vpack.c.b16 %v1406, %v1400
        %v1695 = vpack.c.b16 %v1407, %v1401
        %v1696 = vpack.c.b16 %v1408, %v1402
        %1985 = vmatpush.bf16.msra.mxu0 %v1451
        %1986 = vmatpush.bf16.msra.mxu0 %v1445
        %1987 = vmatpush.bf16.msra.mxu0 %v1439
        %1988 = vmatpush.bf16.msra.mxu0 %v1433
        %1989 = vmatpush.bf16.msra.mxu0 %v1427
        %1990 = vmatpush.bf16.msra.mxu0 %v1421
        %1991 = vmatpush.bf16.msra.mxu0 %v1415
        %1992 = vmatpush.bf16.msra.mxu0 %v1409
        %1993 = vmatmul.bf16.gmra.mxu0 %v237
        %v1994 = vpop.f32.mrf.mxu0
        %v1995 = vadd.f32 %v533, %v1994
        %v1996 = vpop.f32.mrf.mxu0
        %v1997 = vadd.f32 %v533, %v1996
        %1998 = vdwg.mxu0
        %1999 = vmatpush.bf16.msra.mxu0 %v1499
        %2000 = vmatpush.bf16.msra.mxu0 %v1493
        %2001 = vmatpush.bf16.msra.mxu0 %v1487
        %2002 = vmatpush.bf16.msra.mxu0 %v1481
        %2003 = vmatpush.bf16.msra.mxu0 %v1475
        %2004 = vmatpush.bf16.msra.mxu0 %v1469
        %2005 = vmatpush.bf16.msra.mxu0 %v1463
        %2006 = vmatpush.bf16.msra.mxu0 %v1457
        %2007 = vmatmul.bf16.gmra.mxu0 %v238
        %v2008 = vpop.f32.mrf.mxu0
        %v2009 = vadd.f32 %v1995, %v2008
        %v2010 = vpop.f32.mrf.mxu0
        %v2011 = vadd.f32 %v1997, %v2010
        %2012 = vdwg.mxu0
        %2013 = vmatpush.bf16.msra.mxu0 %v1547
        %2014 = vmatpush.bf16.msra.mxu0 %v1541
        %2015 = vmatpush.bf16.msra.mxu0 %v1535
        %2016 = vmatpush.bf16.msra.mxu0 %v1529
        %2017 = vmatpush.bf16.msra.mxu0 %v1523
        %2018 = vmatpush.bf16.msra.mxu0 %v1517
        %2019 = vmatpush.bf16.msra.mxu0 %v1511
        %2020 = vmatpush.bf16.msra.mxu0 %v1505
        %2021 = vmatmul.bf16.gmra.mxu0 %v239
        %v2022 = vpop.f32.mrf.mxu0
        %v2023 = vadd.f32 %v2009, %v2022
        %v2024 = vpop.f32.mrf.mxu0
        %v2025 = vadd.f32 %v2011, %v2024
        %2026 = vdwg.mxu0
        %2027 = vmatpush.bf16.msra.mxu0 %v1595
        %2028 = vmatpush.bf16.msra.mxu0 %v1589
        %2029 = vmatpush.bf16.msra.mxu0 %v1583
        %2030 = vmatpush.bf16.msra.mxu0 %v1577
        %2031 = vmatpush.bf16.msra.mxu0 %v1571
        %2032 = vmatpush.bf16.msra.mxu0 %v1565
        %2033 = vmatpush.bf16.msra.mxu0 %v1559
        %2034 = vmatpush.bf16.msra.mxu0 %v1553
        %2035 = vmatmul.bf16.gmra.mxu0 %v240
        %v2036 = vpop.f32.mrf.mxu0
        %v2037 = vadd.f32 %v2023, %v2036
        %v2038 = vpop.f32.mrf.mxu0
        %v2039 = vadd.f32 %v2025, %v2038
        %2040 = vdwg.mxu0
        %2041 = vmatpush.bf16.msra.mxu0 %v1643
        %2042 = vmatpush.bf16.msra.mxu0 %v1637
        %2043 = vmatpush.bf16.msra.mxu0 %v1631
        %2044 = vmatpush.bf16.msra.mxu0 %v1625
        %2045 = vmatpush.bf16.msra.mxu0 %v1619
        %2046 = vmatpush.bf16.msra.mxu0 %v1613
        %2047 = vmatpush.bf16.msra.mxu0 %v1607
        %2048 = vmatpush.bf16.msra.mxu0 %v1601
        %2049 = vmatmul.bf16.gmra.mxu0 %v241
        %v2050 = vpop.f32.mrf.mxu0
        %v2051 = vadd.f32 %v2037, %v2050
        %v2052 = vpop.f32.mrf.mxu0
        %v2053 = vadd.f32 %v2039, %v2052
        %2054 = vdwg.mxu0
        %2055 = vmatpush.bf16.msra.mxu0 %v1691
        %2056 = vmatpush.bf16.msra.mxu0 %v1685
        %2057 = vmatpush.bf16.msra.mxu0 %v1679
        %2058 = vmatpush.bf16.msra.mxu0 %v1673
        %2059 = vmatpush.bf16.msra.mxu0 %v1667
        %2060 = vmatpush.bf16.msra.mxu0 %v1661
        %2061 = vmatpush.bf16.msra.mxu0 %v1655
        %2062 = vmatpush.bf16.msra.mxu0 %v1649
        %2063 = vmatmul.bf16.gmra.mxu0 %v242
        %v2064 = vpop.f32.mrf.mxu0
        %v2065 = vadd.f32 %v2051, %v2064
        %v2066 = vpop.f32.mrf.mxu0
        %v2067 = vadd.f32 %v2053, %v2066
        %2068 = vdwg.mxu0
        %2069 = vmatpush.bf16.msra.mxu0 %v1452
        %2070 = vmatpush.bf16.msra.mxu0 %v1446
        %2071 = vmatpush.bf16.msra.mxu0 %v1440
        %2072 = vmatpush.bf16.msra.mxu0 %v1434
        %2073 = vmatpush.bf16.msra.mxu0 %v1428
        %2074 = vmatpush.bf16.msra.mxu0 %v1422
        %2075 = vmatpush.bf16.msra.mxu0 %v1416
        %2076 = vmatpush.bf16.msra.mxu0 %v1410
        %2077 = vmatmul.bf16.gmra.mxu0 %v237
        %v2078 = vpop.f32.mrf.mxu0
        %v2079 = vadd.f32 %v534, %v2078
        %v2080 = vpop.f32.mrf.mxu0
        %v2081 = vadd.f32 %v534, %v2080
        %2082 = vdwg.mxu0
        %2083 = vmatpush.bf16.msra.mxu0 %v1500
        %2084 = vmatpush.bf16.msra.mxu0 %v1494
        %2085 = vmatpush.bf16.msra.mxu0 %v1488
        %2086 = vmatpush.bf16.msra.mxu0 %v1482
        %2087 = vmatpush.bf16.msra.mxu0 %v1476
        %2088 = vmatpush.bf16.msra.mxu0 %v1470
        %2089 = vmatpush.bf16.msra.mxu0 %v1464
        %2090 = vmatpush.bf16.msra.mxu0 %v1458
        %2091 = vmatmul.bf16.gmra.mxu0 %v238
        %v2092 = vpop.f32.mrf.mxu0
        %v2093 = vadd.f32 %v2079, %v2092
        %v2094 = vpop.f32.mrf.mxu0
        %v2095 = vadd.f32 %v2081, %v2094
        %2096 = vdwg.mxu0
        %2097 = vmatpush.bf16.msra.mxu0 %v1548
        %2098 = vmatpush.bf16.msra.mxu0 %v1542
        %2099 = vmatpush.bf16.msra.mxu0 %v1536
        %2100 = vmatpush.bf16.msra.mxu0 %v1530
        %2101 = vmatpush.bf16.msra.mxu0 %v1524
        %2102 = vmatpush.bf16.msra.mxu0 %v1518
        %2103 = vmatpush.bf16.msra.mxu0 %v1512
        %2104 = vmatpush.bf16.msra.mxu0 %v1506
        %2105 = vmatmul.bf16.gmra.mxu0 %v239
        %v2106 = vpop.f32.mrf.mxu0
        %v2107 = vadd.f32 %v2093, %v2106
        %v2108 = vpop.f32.mrf.mxu0
        %v2109 = vadd.f32 %v2095, %v2108
        %2110 = vdwg.mxu0
        %2111 = vmatpush.bf16.msra.mxu0 %v1596
        %2112 = vmatpush.bf16.msra.mxu0 %v1590
        %2113 = vmatpush.bf16.msra.mxu0 %v1584
        %2114 = vmatpush.bf16.msra.mxu0 %v1578
        %2115 = vmatpush.bf16.msra.mxu0 %v1572
        %2116 = vmatpush.bf16.msra.mxu0 %v1566
        %2117 = vmatpush.bf16.msra.mxu0 %v1560
        %2118 = vmatpush.bf16.msra.mxu0 %v1554
        %2119 = vmatmul.bf16.gmra.mxu0 %v240
        %v2120 = vpop.f32.mrf.mxu0
        %v2121 = vadd.f32 %v2107, %v2120
        %v2122 = vpop.f32.mrf.mxu0
        %v2123 = vadd.f32 %v2109, %v2122
        %2124 = vdwg.mxu0
        %2125 = vmatpush.bf16.msra.mxu0 %v1644
        %2126 = vmatpush.bf16.msra.mxu0 %v1638
        %2127 = vmatpush.bf16.msra.mxu0 %v1632
        %2128 = vmatpush.bf16.msra.mxu0 %v1626
        %2129 = vmatpush.bf16.msra.mxu0 %v1620
        %2130 = vmatpush.bf16.msra.mxu0 %v1614
        %2131 = vmatpush.bf16.msra.mxu0 %v1608
        %2132 = vmatpush.bf16.msra.mxu0 %v1602
        %2133 = vmatmul.bf16.gmra.mxu0 %v241
        %v2134 = vpop.f32.mrf.mxu0
        %v2135 = vadd.f32 %v2121, %v2134
        %v2136 = vpop.f32.mrf.mxu0
        %v2137 = vadd.f32 %v2123, %v2136
        %2138 = vdwg.mxu0
        %2139 = vmatpush.bf16.msra.mxu0 %v1692
        %2140 = vmatpush.bf16.msra.mxu0 %v1686
        %2141 = vmatpush.bf16.msra.mxu0 %v1680
        %2142 = vmatpush.bf16.msra.mxu0 %v1674
        %2143 = vmatpush.bf16.msra.mxu0 %v1668
        %2144 = vmatpush.bf16.msra.mxu0 %v1662
        %2145 = vmatpush.bf16.msra.mxu0 %v1656
        %2146 = vmatpush.bf16.msra.mxu0 %v1650
        %2147 = vmatmul.bf16.gmra.mxu0 %v242
        %v2148 = vpop.f32.mrf.mxu0
        %v2149 = vadd.f32 %v2135, %v2148
        %v2150 = vpop.f32.mrf.mxu0
        %v2151 = vadd.f32 %v2137, %v2150
        %2152 = vdwg.mxu0
        %2153 = vmatpush.bf16.msra.mxu0 %v1453
        %2154 = vmatpush.bf16.msra.mxu0 %v1447
        %2155 = vmatpush.bf16.msra.mxu0 %v1441
        %2156 = vmatpush.bf16.msra.mxu0 %v1435
        %2157 = vmatpush.bf16.msra.mxu0 %v1429
        %2158 = vmatpush.bf16.msra.mxu0 %v1423
        %2159 = vmatpush.bf16.msra.mxu0 %v1417
        %2160 = vmatpush.bf16.msra.mxu0 %v1411
        %2161 = vmatmul.bf16.gmra.mxu0 %v237
        %v2162 = vpop.f32.mrf.mxu0
        %v2163 = vadd.f32 %v535, %v2162
        %v2164 = vpop.f32.mrf.mxu0
        %v2165 = vadd.f32 %v535, %v2164
        %2166 = vdwg.mxu0
        %2167 = vmatpush.bf16.msra.mxu0 %v1501
        %2168 = vmatpush.bf16.msra.mxu0 %v1495
        %2169 = vmatpush.bf16.msra.mxu0 %v1489
        %2170 = vmatpush.bf16.msra.mxu0 %v1483
        %2171 = vmatpush.bf16.msra.mxu0 %v1477
        %2172 = vmatpush.bf16.msra.mxu0 %v1471
        %2173 = vmatpush.bf16.msra.mxu0 %v1465
        %2174 = vmatpush.bf16.msra.mxu0 %v1459
        %2175 = vmatmul.bf16.gmra.mxu0 %v238
        %v2176 = vpop.f32.mrf.mxu0
        %v2177 = vadd.f32 %v2163, %v2176
        %v2178 = vpop.f32.mrf.mxu0
        %v2179 = vadd.f32 %v2165, %v2178
        %2180 = vdwg.mxu0
        %2181 = vmatpush.bf16.msra.mxu0 %v1549
        %2182 = vmatpush.bf16.msra.mxu0 %v1543
        %2183 = vmatpush.bf16.msra.mxu0 %v1537
        %2184 = vmatpush.bf16.msra.mxu0 %v1531
        %2185 = vmatpush.bf16.msra.mxu0 %v1525
        %2186 = vmatpush.bf16.msra.mxu0 %v1519
        %2187 = vmatpush.bf16.msra.mxu0 %v1513
        %2188 = vmatpush.bf16.msra.mxu0 %v1507
        %2189 = vmatmul.bf16.gmra.mxu0 %v239
        %v2190 = vpop.f32.mrf.mxu0
        %v2191 = vadd.f32 %v2177, %v2190
        %v2192 = vpop.f32.mrf.mxu0
        %v2193 = vadd.f32 %v2179, %v2192
        %2194 = vdwg.mxu0
        %2195 = vmatpush.bf16.msra.mxu0 %v1597
        %2196 = vmatpush.bf16.msra.mxu0 %v1591
        %2197 = vmatpush.bf16.msra.mxu0 %v1585
        %2198 = vmatpush.bf16.msra.mxu0 %v1579
        %2199 = vmatpush.bf16.msra.mxu0 %v1573
        %2200 = vmatpush.bf16.msra.mxu0 %v1567
        %2201 = vmatpush.bf16.msra.mxu0 %v1561
        %2202 = vmatpush.bf16.msra.mxu0 %v1555
        %2203 = vmatmul.bf16.gmra.mxu0 %v240
        %v2204 = vpop.f32.mrf.mxu0
        %v2205 = vadd.f32 %v2191, %v2204
        %v2206 = vpop.f32.mrf.mxu0
        %v2207 = vadd.f32 %v2193, %v2206
        %2208 = vdwg.mxu0
        %2209 = vmatpush.bf16.msra.mxu0 %v1645
        %2210 = vmatpush.bf16.msra.mxu0 %v1639
        %2211 = vmatpush.bf16.msra.mxu0 %v1633
        %2212 = vmatpush.bf16.msra.mxu0 %v1627
        %2213 = vmatpush.bf16.msra.mxu0 %v1621
        %2214 = vmatpush.bf16.msra.mxu0 %v1615
        %2215 = vmatpush.bf16.msra.mxu0 %v1609
        %2216 = vmatpush.bf16.msra.mxu0 %v1603
        %2217 = vmatmul.bf16.gmra.mxu0 %v241
        %v2218 = vpop.f32.mrf.mxu0
        %v2219 = vadd.f32 %v2205, %v2218
        %v2220 = vpop.f32.mrf.mxu0
        %v2221 = vadd.f32 %v2207, %v2220
        %2222 = vdwg.mxu0
        %2223 = vmatpush.bf16.msra.mxu0 %v1693
        %2224 = vmatpush.bf16.msra.mxu0 %v1687
        %2225 = vmatpush.bf16.msra.mxu0 %v1681
        %2226 = vmatpush.bf16.msra.mxu0 %v1675
        %2227 = vmatpush.bf16.msra.mxu0 %v1669
        %2228 = vmatpush.bf16.msra.mxu0 %v1663
        %2229 = vmatpush.bf16.msra.mxu0 %v1657
        %2230 = vmatpush.bf16.msra.mxu0 %v1651
        %2231 = vmatmul.bf16.gmra.mxu0 %v242
        %v2232 = vpop.f32.mrf.mxu0
        %v2233 = vadd.f32 %v2219, %v2232
        %v2234 = vpop.f32.mrf.mxu0
        %v2235 = vadd.f32 %v2221, %v2234
        %2236 = vdwg.mxu0
        %2237 = vmatpush.bf16.msra.mxu0 %v1454
        %2238 = vmatpush.bf16.msra.mxu0 %v1448
        %2239 = vmatpush.bf16.msra.mxu0 %v1442
        %2240 = vmatpush.bf16.msra.mxu0 %v1436
        %2241 = vmatpush.bf16.msra.mxu0 %v1430
        %2242 = vmatpush.bf16.msra.mxu0 %v1424
        %2243 = vmatpush.bf16.msra.mxu0 %v1418
        %2244 = vmatpush.bf16.msra.mxu0 %v1412
        %2245 = vmatmul.bf16.gmra.mxu0 %v237
        %v2246 = vpop.f32.mrf.mxu0
        %v2247 = vadd.f32 %v536, %v2246
        %v2248 = vpop.f32.mrf.mxu0
        %v2249 = vadd.f32 %v536, %v2248
        %2250 = vdwg.mxu0
        %2251 = vmatpush.bf16.msra.mxu0 %v1502
        %2252 = vmatpush.bf16.msra.mxu0 %v1496
        %2253 = vmatpush.bf16.msra.mxu0 %v1490
        %2254 = vmatpush.bf16.msra.mxu0 %v1484
        %2255 = vmatpush.bf16.msra.mxu0 %v1478
        %2256 = vmatpush.bf16.msra.mxu0 %v1472
        %2257 = vmatpush.bf16.msra.mxu0 %v1466
        %2258 = vmatpush.bf16.msra.mxu0 %v1460
        %2259 = vmatmul.bf16.gmra.mxu0 %v238
        %v2260 = vpop.f32.mrf.mxu0
        %v2261 = vadd.f32 %v2247, %v2260
        %v2262 = vpop.f32.mrf.mxu0
        %v2263 = vadd.f32 %v2249, %v2262
        %2264 = vdwg.mxu0
        %2265 = vmatpush.bf16.msra.mxu0 %v1550
        %2266 = vmatpush.bf16.msra.mxu0 %v1544
        %2267 = vmatpush.bf16.msra.mxu0 %v1538
        %2268 = vmatpush.bf16.msra.mxu0 %v1532
        %2269 = vmatpush.bf16.msra.mxu0 %v1526
        %2270 = vmatpush.bf16.msra.mxu0 %v1520
        %2271 = vmatpush.bf16.msra.mxu0 %v1514
        %2272 = vmatpush.bf16.msra.mxu0 %v1508
        %2273 = vmatmul.bf16.gmra.mxu0 %v239
        %v2274 = vpop.f32.mrf.mxu0
        %v2275 = vadd.f32 %v2261, %v2274
        %v2276 = vpop.f32.mrf.mxu0
        %v2277 = vadd.f32 %v2263, %v2276
        %2278 = vdwg.mxu0
        %2279 = vmatpush.bf16.msra.mxu0 %v1598
        %2280 = vmatpush.bf16.msra.mxu0 %v1592
        %2281 = vmatpush.bf16.msra.mxu0 %v1586
        %2282 = vmatpush.bf16.msra.mxu0 %v1580
        %2283 = vmatpush.bf16.msra.mxu0 %v1574
        %2284 = vmatpush.bf16.msra.mxu0 %v1568
        %2285 = vmatpush.bf16.msra.mxu0 %v1562
        %2286 = vmatpush.bf16.msra.mxu0 %v1556
        %2287 = vmatmul.bf16.gmra.mxu0 %v240
        %v2288 = vpop.f32.mrf.mxu0
        %v2289 = vadd.f32 %v2275, %v2288
        %v2290 = vpop.f32.mrf.mxu0
        %v2291 = vadd.f32 %v2277, %v2290
        %2292 = vdwg.mxu0
        %2293 = vmatpush.bf16.msra.mxu0 %v1646
        %2294 = vmatpush.bf16.msra.mxu0 %v1640
        %2295 = vmatpush.bf16.msra.mxu0 %v1634
        %2296 = vmatpush.bf16.msra.mxu0 %v1628
        %2297 = vmatpush.bf16.msra.mxu0 %v1622
        %2298 = vmatpush.bf16.msra.mxu0 %v1616
        %2299 = vmatpush.bf16.msra.mxu0 %v1610
        %2300 = vmatpush.bf16.msra.mxu0 %v1604
        %2301 = vmatmul.bf16.gmra.mxu0 %v241
        %v2302 = vpop.f32.mrf.mxu0
        %v2303 = vadd.f32 %v2289, %v2302
        %v2304 = vpop.f32.mrf.mxu0
        %v2305 = vadd.f32 %v2291, %v2304
        %2306 = vdwg.mxu0
        %2307 = vmatpush.bf16.msra.mxu0 %v1694
        %2308 = vmatpush.bf16.msra.mxu0 %v1688
        %2309 = vmatpush.bf16.msra.mxu0 %v1682
        %2310 = vmatpush.bf16.msra.mxu0 %v1676
        %2311 = vmatpush.bf16.msra.mxu0 %v1670
        %2312 = vmatpush.bf16.msra.mxu0 %v1664
        %2313 = vmatpush.bf16.msra.mxu0 %v1658
        %2314 = vmatpush.bf16.msra.mxu0 %v1652
        %2315 = vmatmul.bf16.gmra.mxu0 %v242
        %v2316 = vpop.f32.mrf.mxu0
        %v2317 = vadd.f32 %v2303, %v2316
        %v2318 = vpop.f32.mrf.mxu0
        %v2319 = vadd.f32 %v2305, %v2318
        %2320 = vdwg.mxu0
        %2321 = vmatpush.bf16.msra.mxu0 %v1455
        %2322 = vmatpush.bf16.msra.mxu0 %v1449
        %2323 = vmatpush.bf16.msra.mxu0 %v1443
        %2324 = vmatpush.bf16.msra.mxu0 %v1437
        %2325 = vmatpush.bf16.msra.mxu0 %v1431
        %2326 = vmatpush.bf16.msra.mxu0 %v1425
        %2327 = vmatpush.bf16.msra.mxu0 %v1419
        %2328 = vmatpush.bf16.msra.mxu0 %v1413
        %2329 = vmatmul.bf16.gmra.mxu0 %v237
        %v2330 = vpop.f32.mrf.mxu0
        %v2331 = vadd.f32 %v537, %v2330
        %v2332 = vpop.f32.mrf.mxu0
        %v2333 = vadd.f32 %v537, %v2332
        %2334 = vdwg.mxu0
        %2335 = vmatpush.bf16.msra.mxu0 %v1503
        %2336 = vmatpush.bf16.msra.mxu0 %v1497
        %2337 = vmatpush.bf16.msra.mxu0 %v1491
        %2338 = vmatpush.bf16.msra.mxu0 %v1485
        %2339 = vmatpush.bf16.msra.mxu0 %v1479
        %2340 = vmatpush.bf16.msra.mxu0 %v1473
        %2341 = vmatpush.bf16.msra.mxu0 %v1467
        %2342 = vmatpush.bf16.msra.mxu0 %v1461
        %2343 = vmatmul.bf16.gmra.mxu0 %v238
        %v2344 = vpop.f32.mrf.mxu0
        %v2345 = vadd.f32 %v2331, %v2344
        %v2346 = vpop.f32.mrf.mxu0
        %v2347 = vadd.f32 %v2333, %v2346
        %2348 = vdwg.mxu0
        %2349 = vmatpush.bf16.msra.mxu0 %v1551
        %2350 = vmatpush.bf16.msra.mxu0 %v1545
        %2351 = vmatpush.bf16.msra.mxu0 %v1539
        %2352 = vmatpush.bf16.msra.mxu0 %v1533
        %2353 = vmatpush.bf16.msra.mxu0 %v1527
        %2354 = vmatpush.bf16.msra.mxu0 %v1521
        %2355 = vmatpush.bf16.msra.mxu0 %v1515
        %2356 = vmatpush.bf16.msra.mxu0 %v1509
        %2357 = vmatmul.bf16.gmra.mxu0 %v239
        %v2358 = vpop.f32.mrf.mxu0
        %v2359 = vadd.f32 %v2345, %v2358
        %v2360 = vpop.f32.mrf.mxu0
        %v2361 = vadd.f32 %v2347, %v2360
        %2362 = vdwg.mxu0
        %2363 = vmatpush.bf16.msra.mxu0 %v1599
        %2364 = vmatpush.bf16.msra.mxu0 %v1593
        %2365 = vmatpush.bf16.msra.mxu0 %v1587
        %2366 = vmatpush.bf16.msra.mxu0 %v1581
        %2367 = vmatpush.bf16.msra.mxu0 %v1575
        %2368 = vmatpush.bf16.msra.mxu0 %v1569
        %2369 = vmatpush.bf16.msra.mxu0 %v1563
        %2370 = vmatpush.bf16.msra.mxu0 %v1557
        %2371 = vmatmul.bf16.gmra.mxu0 %v240
        %v2372 = vpop.f32.mrf.mxu0
        %v2373 = vadd.f32 %v2359, %v2372
        %v2374 = vpop.f32.mrf.mxu0
        %v2375 = vadd.f32 %v2361, %v2374
        %2376 = vdwg.mxu0
        %2377 = vmatpush.bf16.msra.mxu0 %v1647
        %2378 = vmatpush.bf16.msra.mxu0 %v1641
        %2379 = vmatpush.bf16.msra.mxu0 %v1635
        %2380 = vmatpush.bf16.msra.mxu0 %v1629
        %2381 = vmatpush.bf16.msra.mxu0 %v1623
        %2382 = vmatpush.bf16.msra.mxu0 %v1617
        %2383 = vmatpush.bf16.msra.mxu0 %v1611
        %2384 = vmatpush.bf16.msra.mxu0 %v1605
        %2385 = vmatmul.bf16.gmra.mxu0 %v241
        %v2386 = vpop.f32.mrf.mxu0
        %v2387 = vadd.f32 %v2373, %v2386
        %v2388 = vpop.f32.mrf.mxu0
        %v2389 = vadd.f32 %v2375, %v2388
        %2390 = vdwg.mxu0
        %2391 = vmatpush.bf16.msra.mxu0 %v1695
        %2392 = vmatpush.bf16.msra.mxu0 %v1689
        %2393 = vmatpush.bf16.msra.mxu0 %v1683
        %2394 = vmatpush.bf16.msra.mxu0 %v1677
        %2395 = vmatpush.bf16.msra.mxu0 %v1671
        %2396 = vmatpush.bf16.msra.mxu0 %v1665
        %2397 = vmatpush.bf16.msra.mxu0 %v1659
        %2398 = vmatpush.bf16.msra.mxu0 %v1653
        %2399 = vmatmul.bf16.gmra.mxu0 %v242
        %v2400 = vpop.f32.mrf.mxu0
        %v2401 = vadd.f32 %v2387, %v2400
        %v2402 = vpop.f32.mrf.mxu0
        %v2403 = vadd.f32 %v2389, %v2402
        %2404 = vdwg.mxu0
        %2405 = vmatpush.bf16.msra.mxu0 %v1456
        %2406 = vmatpush.bf16.msra.mxu0 %v1450
        %2407 = vmatpush.bf16.msra.mxu0 %v1444
        %2408 = vmatpush.bf16.msra.mxu0 %v1438
        %2409 = vmatpush.bf16.msra.mxu0 %v1432
        %2410 = vmatpush.bf16.msra.mxu0 %v1426
        %2411 = vmatpush.bf16.msra.mxu0 %v1420
        %2412 = vmatpush.bf16.msra.mxu0 %v1414
        %2413 = vmatmul.bf16.gmra.mxu0 %v237
        %v2414 = vpop.f32.mrf.mxu0
        %v2415 = vadd.f32 %v538, %v2414
        %v2416 = vpop.f32.mrf.mxu0
        %v2417 = vadd.f32 %v538, %v2416
        %2418 = vdwg.mxu0
        %2419 = vmatpush.bf16.msra.mxu0 %v1504
        %2420 = vmatpush.bf16.msra.mxu0 %v1498
        %2421 = vmatpush.bf16.msra.mxu0 %v1492
        %2422 = vmatpush.bf16.msra.mxu0 %v1486
        %2423 = vmatpush.bf16.msra.mxu0 %v1480
        %2424 = vmatpush.bf16.msra.mxu0 %v1474
        %2425 = vmatpush.bf16.msra.mxu0 %v1468
        %2426 = vmatpush.bf16.msra.mxu0 %v1462
        %2427 = vmatmul.bf16.gmra.mxu0 %v238
        %v2428 = vpop.f32.mrf.mxu0
        %v2429 = vadd.f32 %v2415, %v2428
        %v2430 = vpop.f32.mrf.mxu0
        %v2431 = vadd.f32 %v2417, %v2430
        %2432 = vdwg.mxu0
        %2433 = vmatpush.bf16.msra.mxu0 %v1552
        %2434 = vmatpush.bf16.msra.mxu0 %v1546
        %2435 = vmatpush.bf16.msra.mxu0 %v1540
        %2436 = vmatpush.bf16.msra.mxu0 %v1534
        %2437 = vmatpush.bf16.msra.mxu0 %v1528
        %2438 = vmatpush.bf16.msra.mxu0 %v1522
        %2439 = vmatpush.bf16.msra.mxu0 %v1516
        %2440 = vmatpush.bf16.msra.mxu0 %v1510
        %2441 = vmatmul.bf16.gmra.mxu0 %v239
        %v2442 = vpop.f32.mrf.mxu0
        %v2443 = vadd.f32 %v2429, %v2442
        %v2444 = vpop.f32.mrf.mxu0
        %v2445 = vadd.f32 %v2431, %v2444
        %2446 = vdwg.mxu0
        %2447 = vmatpush.bf16.msra.mxu0 %v1600
        %2448 = vmatpush.bf16.msra.mxu0 %v1594
        %2449 = vmatpush.bf16.msra.mxu0 %v1588
        %2450 = vmatpush.bf16.msra.mxu0 %v1582
        %2451 = vmatpush.bf16.msra.mxu0 %v1576
        %2452 = vmatpush.bf16.msra.mxu0 %v1570
        %2453 = vmatpush.bf16.msra.mxu0 %v1564
        %2454 = vmatpush.bf16.msra.mxu0 %v1558
        %2455 = vmatmul.bf16.gmra.mxu0 %v240
        %v2456 = vpop.f32.mrf.mxu0
        %v2457 = vadd.f32 %v2443, %v2456
        %v2458 = vpop.f32.mrf.mxu0
        %v2459 = vadd.f32 %v2445, %v2458
        %2460 = vdwg.mxu0
        %2461 = vmatpush.bf16.msra.mxu0 %v1648
        %2462 = vmatpush.bf16.msra.mxu0 %v1642
        %2463 = vmatpush.bf16.msra.mxu0 %v1636
        %2464 = vmatpush.bf16.msra.mxu0 %v1630
        %2465 = vmatpush.bf16.msra.mxu0 %v1624
        %2466 = vmatpush.bf16.msra.mxu0 %v1618
        %2467 = vmatpush.bf16.msra.mxu0 %v1612
        %2468 = vmatpush.bf16.msra.mxu0 %v1606
        %2469 = vmatmul.bf16.gmra.mxu0 %v241
        %v2470 = vpop.f32.mrf.mxu0
        %v2471 = vadd.f32 %v2457, %v2470
        %v2472 = vpop.f32.mrf.mxu0
        %v2473 = vadd.f32 %v2459, %v2472
        %2474 = vdwg.mxu0
        %2475 = vmatpush.bf16.msra.mxu0 %v1696
        %2476 = vmatpush.bf16.msra.mxu0 %v1690
        %2477 = vmatpush.bf16.msra.mxu0 %v1684
        %2478 = vmatpush.bf16.msra.mxu0 %v1678
        %2479 = vmatpush.bf16.msra.mxu0 %v1672
        %2480 = vmatpush.bf16.msra.mxu0 %v1666
        %2481 = vmatpush.bf16.msra.mxu0 %v1660
        %2482 = vmatpush.bf16.msra.mxu0 %v1654
        %2483 = vmatmul.bf16.gmra.mxu0 %v242
        %v2484 = vpop.f32.mrf.mxu0
        %v2485 = vadd.f32 %v2471, %v2484
        %v2486 = vpop.f32.mrf.mxu0
        %v2487 = vadd.f32 %v2473, %v2486
        %2488 = vdwg.mxu0
        %2489 = vst [vmem:[%s222] sm:$0xff] %v2065
        %2490 = vst [vmem:[%s222 + $0x8] sm:$0xff] %v2149
        %2491 = vst [vmem:[%s222 + $0x10] sm:$0xff] %v2233
        %2492 = vst [vmem:[%s222 + $0x18] sm:$0xff] %v2317
        %2493 = vst [vmem:[%s222 + $0x20] sm:$0xff] %v2401
        %2494 = vst [vmem:[%s222 + $0x28] sm:$0xff] %v2485
        %2495 = vst [vmem:[%s222 + $0x30] sm:$0xff] %v2067
        %2496 = vst [vmem:[%s222 + $0x38] sm:$0xff] %v2151
        %2497 = vst [vmem:[%s222 + $0x40] sm:$0xff] %v2235
        %2498 = vst [vmem:[%s222 + $0x48] sm:$0xff] %v2319
        %2499 = vst [vmem:[%s222 + $0x50] sm:$0xff] %v2403
        %2500 = vst [vmem:[%s222 + $0x58] sm:$0xff] %v2487
        %s2501 = sand.u32 %s97, 1
        %s2502 = scalar_lea.sflag [#allocation4], %s2501
        %s2503 = sand.u32 %s97, 1
        %s2504 = smul.addr %s2503, 96
        %s2505 = scalar_lea.vmem [#allocation8], %s2504
        // Predicated region
        $region45: #{tpu_custom_call.1} parent=31 // pred_check
          %p2506 = pneg %p107
        $region46: #{tpu_custom_call.1} parent=31 // pred_check_branch
          %2508 = sbr.rel (%p2506) target = $region48
        $region47: #{tpu_custom_call.1} parent=31 // pred_region
          %s2509 = smul.u32 2, %s21
          %2511 = vsyncadd %s2502, 0
          %s2512 = smul.addr %s2509, 6
          %s2513 = smul.addr %s2512, 8
          %s2514 = scalar_lea.hbm %s3, %s2513
          %s2515 = sshll.u32 %s2505, 4
          %s2516 = int_to_ptr.vmem [resolvable:$true] %s2515
          %s2517 = sshll.u32 %s2514, 4
          %s2518 = int_to_ptr.hbm [resolvable:$true] %s2517
          %2523 = dma.vmem_to_hbm [thread:$0]  %s2516, 1536, %s2518, %s2502, 768, 768, 48
        $region48: #{tpu_custom_call.1} parent=31 // pred_fallthru
          _
      $region32: #{tpu_custom_call.1} parent=5 // pred_fallthru
        _
      %p2524 = scmp.le.s32.totalorder 2, %s16
      // Predicated region
      $region49: #{tpu_custom_call.1} parent=5 // pred_check
        %p2525 = pneg %p2524
      $region50: #{tpu_custom_call.1} parent=5 // pred_check_branch
        %2527 = sbr.rel (%p2525) target = $region52
      $region51: #{tpu_custom_call.1} parent=5 // pred_region
        %s2528 = ssub.s32 %s16, 2
        // Predicated region
        $region53: #{tpu_custom_call.1} parent=51 // pred_check
          %p2529 = pneg %p113
        $region54: #{tpu_custom_call.1} parent=51 // pred_check_branch
          %2531 = sbr.rel (%p2529) target = $region56
        $region55: #{tpu_custom_call.1} parent=51 // pred_region
          %s2532 = sand.u32 %s98, 1
          %s2533 = scalar_lea.sflag [#allocation4], %s2532
          %s2534 = sand.u32 %s98, 1
          %s2535 = smul.addr %s2534, 96
          %s2536 = scalar_lea.vmem [#allocation8], %s2535
          %2538 = dma.done %s2533, 1536
        $region56: #{tpu_custom_call.1} parent=51 // pred_fallthru
          _
      $region52: #{tpu_custom_call.1} parent=5 // pred_fallthru
        _
    $region6: #{tpu_custom_call.1} parent=1 // loop_footer
      %s20 = sadd.s32 1, %s16
    $region7: #{tpu_custom_call.1} parent=1 // loop_footer_branch
      %15 = sbr.rel target = $region3
    $region8: #{tpu_custom_call.1} parent=1 // loop_exit
      _
    %2539 = vsyncpa [#allocation3], 1
    %s2540 = scalar_lea.sflag [#allocation3], 1
    %2541 = vsyncpa %s2540, 1
    %2542 = vsyncpa [#allocation6], 1
    %2543 = vsyncpa [#allocation4], 1
    %s2544 = scalar_lea.sflag [#allocation4], 1
    %2545 = vsyncpa %s2544, 1

</llo_original>
